<compile_context>
chip_gen: v6e
topology: v6e:2x2x1
jax: 0.10.0
libtpu: 0.0.40
codegen_flags: <defaults>
</compile_context>

<pallas_src>
import jax
import jax.numpy as jnp
from jax.experimental import pallas as pl
from jax.experimental.pallas import tpu as pltpu

_LANE = 128


def _cdiv(a, b):
    return (a + b - 1) // b


def _round_up(x, m):
    return _cdiv(x, m) * m


def _sigmoid_f32(x):
    # tanh-based sigmoid: one EUP transcendental, no exp(-x) overflow path,
    # kept in f32 (safe on v5e whose VPU/EUP lack bf16).
    return 0.5 * jnp.tanh(0.5 * x) + 0.5


def mlp_kernel(x_ref, w1_ref, b1_ref, w2_ref, b2_ref, w3_ref, b3_ref, o_ref):
    # hidden1 + sigmoid  (bf16 MXU operands, f32 accumulate, f32 elementwise)
    x = x_ref[...]
    h = jnp.dot(x.astype(jnp.bfloat16), w1_ref[...],
                preferred_element_type=jnp.float32) + b1_ref[...]
    h = _sigmoid_f32(h)
    # hidden2 + sigmoid
    h = jnp.dot(h.astype(jnp.bfloat16), w2_ref[...],
                preferred_element_type=jnp.float32) + b2_ref[...]
    h = _sigmoid_f32(h)
    # predict layer: weights lane-padded to 128 columns; the padded bias is
    # -1e30 (f32), so padded logits underflow to 0 in exp() and vanish from
    # the softmax reductions -- no explicit mask needed in the kernel.
    logits = jnp.dot(h.astype(jnp.bfloat16), w3_ref[...],
                     preferred_element_type=jnp.float32) + b3_ref[...]
    m = jnp.max(logits, axis=-1, keepdims=True)
    e = jnp.exp(logits - m)
    denom = jnp.sum(e, axis=-1, keepdims=True)
    probs = e / denom                       # exact f32 division: rows sum to 1
    # Store only the real output columns (small masked store beats writing a
    # 128-wide f32 slab: ~32x less HBM write traffic at n_out=4).
    o_ref[...] = probs[:, :o_ref.shape[-1]].astype(o_ref.dtype)


def prepare_params(params):
    """One-time prep (call once, outside the hot path):
    lane-pad the predict layer to 128 output columns and fold the softmax
    mask into the padded bias (-1e30 => exp underflows to 0)."""
    w1, b1, w2, b2, w3, b3 = params
    n_hidden, n_out = w3.shape
    n_out_pad = _round_up(n_out, _LANE)
    w3p = jnp.zeros((n_hidden, n_out_pad), w3.dtype).at[:, :n_out].set(w3)
    b3p = jnp.full((1, n_out_pad), -1e30, jnp.float32).at[:, :n_out].set(b3)
    return (w1, b1, w2, b2, w3p, b3p)


def net_forward(x, prepared_params, n_out, *, num_batch_tiles=2, tb=None):
    """Forward pass of Net: Linear->sigmoid->Linear->sigmoid->Linear->softmax.

    `prepared_params` must come from prepare_params().  By default the batch
    is split into at most 2 tiles: 2 "parallel" grid steps keep both v7x
    TensorCores busy while adding only one extra ~0.35us step on v5e/v6e.
    """
    w1, b1, w2, b2, w3p, b3p = prepared_params
    batch, n_in = x.shape
    n_hidden = w1.shape[1]
    n_out_pad = w3p.shape[1]

    if tb is None:
        tiles = max(1, min(num_batch_tiles, _cdiv(batch, 8)))
        tb = _round_up(_cdiv(batch, tiles), 8)
    else:
        tb = _round_up(min(tb, _round_up(batch, 8)), 8)
    bp = _round_up(batch, tb)
    if bp != batch:
        x = jnp.zeros((bp, n_in), x.dtype).at[:batch].set(x)
    grid = (bp // tb,)

    out = pl.pallas_call(
        mlp_kernel,
        out_shape=jax.ShapeDtypeStruct((bp, n_out), jnp.float32),
        grid_spec=pltpu.PrefetchScalarGridSpec(
            num_scalar_prefetch=0,
            grid=grid,
            in_specs=[
                pl.BlockSpec((tb, n_in), lambda i: (i, 0)),            # x tile
                pl.BlockSpec((n_in, n_hidden), lambda i: (0, 0)),      # w1 resident
                pl.BlockSpec((1, n_hidden), lambda i: (0, 0)),         # b1
                pl.BlockSpec((n_hidden, n_hidden), lambda i: (0, 0)),  # w2
                pl.BlockSpec((1, n_hidden), lambda i: (0, 0)),         # b2
                pl.BlockSpec((n_hidden, n_out_pad), lambda i: (0, 0)), # w3 (padded)
                pl.BlockSpec((1, n_out_pad), lambda i: (0, 0)),        # b3 (padded, mask folded in)
            ],
            out_specs=pl.BlockSpec((tb, n_out), lambda i: (i, 0)),
        ),
        compiler_params=pltpu.CompilerParams(
            dimension_semantics=("parallel",)),  # shards batch tiles across TCs on v7x
    )(x, w1, b1, w2, b2, w3p, b3p)

    return out[:batch]


def init_params(key, n_input, n_hidden, n_output):
    """Deterministic init mimicking PyTorch nn.Linear default (uniform +/-1/sqrt(fan_in)).

    Weights are stored in bf16 (halves HBM->VMEM DMA bytes, native MXU dtype);
    biases stay f32 since the bias add / elementwise math runs in f32.
    """
    ks = jax.random.split(key, 6)

    def lin(kw, kb, fan_in, fan_out):
        bound = 1.0 / jnp.sqrt(fan_in)
        w = jax.random.uniform(kw, (fan_in, fan_out), jnp.float32, -bound, bound)
        b = jax.random.uniform(kb, (1, fan_out), jnp.float32, -bound, bound)
        return w.astype(jnp.bfloat16), b

    w1, b1 = lin(ks[0], ks[1], n_input, n_hidden)
    w2, b2 = lin(ks[2], ks[3], n_hidden, n_hidden)
    w3, b3 = lin(ks[4], ks[5], n_hidden, n_output)
    return (w1, b1, w2, b2, w3, b3)


def net_reference(x, params):
    """Pure-JAX f32 reference of the same forward pass."""
    w1, b1, w2, b2, w3, b3 = params
    h = jax.nn.sigmoid(x @ w1.astype(jnp.float32) + b1)
    h = jax.nn.sigmoid(h @ w2.astype(jnp.float32) + b2)
    logits = h @ w3.astype(jnp.float32) + b3
    return jax.nn.softmax(logits, axis=-1)


if __name__ == "__main__":
    key = jax.random.PRNGKey(0)
    n_input, n_hidden, n_output = 4, 32, 4
    batch = 512  # many rows per call amortizes launch/DMA overhead

    k_x, k_p = jax.random.split(key)
    x = jax.random.normal(k_x, (batch, n_input), jnp.float32)
    params = init_params(k_p, n_input, n_hidden, n_output)
    prepared = prepare_params(params)  # one-time pad + softmax-mask fold

    out = net_forward(x, prepared, n_output)
    jax.block_until_ready(out)

    assert out.shape == (batch, n_output)
    # softmax rows sum to 1 (exact f32 division inside the kernel)
    row_sums = jnp.sum(out, axis=-1)
    assert jnp.allclose(row_sums, jnp.ones_like(row_sums), atol=1e-3)
    # matches pure-JAX reference (bf16 matmul operands)
    ref = net_reference(x, params)
    assert jnp.allclose(out, ref, atol=2e-2)

    print("KERNEL_OK")
</pallas_src>

<mosaic_0001>
module attributes {stable_mosaic.version = 11 : i64} {
  func.func @mlp_kernel(%arg0: i32, %arg1: memref<256x4xf32, #tpu.memory_space<vmem>>, %arg2: memref<4x32xbf16, #tpu.memory_space<vmem>>, %arg3: memref<1x32xf32, #tpu.memory_space<vmem>>, %arg4: memref<32x32xbf16, #tpu.memory_space<vmem>>, %arg5: memref<1x32xf32, #tpu.memory_space<vmem>>, %arg6: memref<32x128xbf16, #tpu.memory_space<vmem>>, %arg7: memref<1x128xf32, #tpu.memory_space<vmem>>, %arg8: memref<256x4xf32, #tpu.memory_space<vmem>>) attributes {dimension_semantics = [#tpu.dimension_semantics<parallel>], iteration_bounds = array<i64: 2>, scalar_prefetch = 0 : i64, scratch_operands = 0 : i64, tpu.core_type = #tpu.core_type<tc>, window_params = [{transform_indices = @transform_0, window_bounds = array<i64: 256, 4>}, {pipeline_mode = #tpu.pipeline_mode<synchronous>, transform_indices = @transform_1, window_bounds = array<i64: 4, 32>}, {pipeline_mode = #tpu.pipeline_mode<synchronous>, transform_indices = @transform_2, window_bounds = array<i64: 1, 32>}, {pipeline_mode = #tpu.pipeline_mode<synchronous>, transform_indices = @transform_3, window_bounds = array<i64: 32, 32>}, {pipeline_mode = #tpu.pipeline_mode<synchronous>, transform_indices = @transform_4, window_bounds = array<i64: 1, 32>}, {pipeline_mode = #tpu.pipeline_mode<synchronous>, transform_indices = @transform_5, window_bounds = array<i64: 32, 128>}, {pipeline_mode = #tpu.pipeline_mode<synchronous>, transform_indices = @transform_6, window_bounds = array<i64: 1, 128>}, {transform_indices = @transform_7, window_bounds = array<i64: 256, 4>}]} {
    %c0 = arith.constant 0 : index
    %c0_0 = arith.constant 0 : index
    %0 = vector.load %arg1[%c0, %c0_0] : memref<256x4xf32, #tpu.memory_space<vmem>>, vector<256x4xf32>
    %1 = arith.truncf %0 : vector<256x4xf32> to vector<256x4xbf16>
    %c0_1 = arith.constant 0 : index
    %c0_2 = arith.constant 0 : index
    %2 = vector.load %arg2[%c0_1, %c0_2] : memref<4x32xbf16, #tpu.memory_space<vmem>>, vector<4x32xbf16>
    %cst = arith.constant dense<0.000000e+00> : vector<256x32xf32>
    %3 = tpu.matmul %1, %2, %cst {dimension_numbers = #tpu.dot_dimension_numbers<[1], [0], [0], [1], [0, 0, 1, 1], [], []>} : vector<256x4xbf16>, vector<4x32xbf16>, vector<256x32xf32> -> vector<256x32xf32>
    %c0_3 = arith.constant 0 : index
    %c0_4 = arith.constant 0 : index
    %4 = vector.load %arg3[%c0_3, %c0_4] : memref<1x32xf32, #tpu.memory_space<vmem>>, vector<1x32xf32>
    %5 = vector.broadcast %4 : vector<1x32xf32> to vector<256x32xf32>
    %6 = arith.addf %3, %5 : vector<256x32xf32>
    %cst_5 = arith.constant 5.000000e-01 : f32
    %7 = vector.broadcast %cst_5 : f32 to vector<256x32xf32>
    %8 = arith.mulf %7, %6 : vector<256x32xf32>
    %9 = math.tanh %8 : vector<256x32xf32>
    %cst_6 = arith.constant 5.000000e-01 : f32
    %10 = vector.broadcast %cst_6 : f32 to vector<256x32xf32>
    %11 = arith.mulf %10, %9 : vector<256x32xf32>
    %cst_7 = arith.constant 5.000000e-01 : f32
    %12 = vector.broadcast %cst_7 : f32 to vector<256x32xf32>
    %13 = arith.addf %11, %12 : vector<256x32xf32>
    %14 = arith.truncf %13 : vector<256x32xf32> to vector<256x32xbf16>
    %c0_8 = arith.constant 0 : index
    %c0_9 = arith.constant 0 : index
    %15 = vector.load %arg4[%c0_8, %c0_9] : memref<32x32xbf16, #tpu.memory_space<vmem>>, vector<32x32xbf16>
    %cst_10 = arith.constant dense<0.000000e+00> : vector<256x32xf32>
    %16 = tpu.matmul %14, %15, %cst_10 {dimension_numbers = #tpu.dot_dimension_numbers<[1], [0], [0], [1], [0, 0, 1, 1], [], []>} : vector<256x32xbf16>, vector<32x32xbf16>, vector<256x32xf32> -> vector<256x32xf32>
    %c0_11 = arith.constant 0 : index
    %c0_12 = arith.constant 0 : index
    %17 = vector.load %arg5[%c0_11, %c0_12] : memref<1x32xf32, #tpu.memory_space<vmem>>, vector<1x32xf32>
    %18 = vector.broadcast %17 : vector<1x32xf32> to vector<256x32xf32>
    %19 = arith.addf %16, %18 : vector<256x32xf32>
    %cst_13 = arith.constant 5.000000e-01 : f32
    %20 = vector.broadcast %cst_13 : f32 to vector<256x32xf32>
    %21 = arith.mulf %20, %19 : vector<256x32xf32>
    %22 = math.tanh %21 : vector<256x32xf32>
    %cst_14 = arith.constant 5.000000e-01 : f32
    %23 = vector.broadcast %cst_14 : f32 to vector<256x32xf32>
    %24 = arith.mulf %23, %22 : vector<256x32xf32>
    %cst_15 = arith.constant 5.000000e-01 : f32
    %25 = vector.broadcast %cst_15 : f32 to vector<256x32xf32>
    %26 = arith.addf %24, %25 : vector<256x32xf32>
    %27 = arith.truncf %26 : vector<256x32xf32> to vector<256x32xbf16>
    %c0_16 = arith.constant 0 : index
    %c0_17 = arith.constant 0 : index
    %28 = vector.load %arg6[%c0_16, %c0_17] : memref<32x128xbf16, #tpu.memory_space<vmem>>, vector<32x128xbf16>
    %cst_18 = arith.constant dense<0.000000e+00> : vector<256x128xf32>
    %29 = tpu.matmul %27, %28, %cst_18 {dimension_numbers = #tpu.dot_dimension_numbers<[1], [0], [0], [1], [0, 0, 1, 1], [], []>} : vector<256x32xbf16>, vector<32x128xbf16>, vector<256x128xf32> -> vector<256x128xf32>
    %c0_19 = arith.constant 0 : index
    %c0_20 = arith.constant 0 : index
    %30 = vector.load %arg7[%c0_19, %c0_20] : memref<1x128xf32, #tpu.memory_space<vmem>>, vector<1x128xf32>
    %31 = vector.broadcast %30 : vector<1x128xf32> to vector<256x128xf32>
    %32 = arith.addf %29, %31 : vector<256x128xf32>
    %cst_21 = arith.constant dense<0xFF800000> : vector<256xf32>
    %33 = vector.multi_reduction <maximumf>, %32, %cst_21 [1] : vector<256x128xf32> to vector<256xf32>
    %34 = vector.shape_cast %33 : vector<256xf32> to vector<256x1xf32>
    %35 = vector.broadcast %34 : vector<256x1xf32> to vector<256x128xf32>
    %36 = arith.subf %32, %35 : vector<256x128xf32>
    %37 = math.exp %36 : vector<256x128xf32>
    %cst_22 = arith.constant dense<0.000000e+00> : vector<256xf32>
    %38 = vector.multi_reduction <add>, %37, %cst_22 [1] : vector<256x128xf32> to vector<256xf32>
    %39 = vector.shape_cast %38 : vector<256xf32> to vector<256x1xf32>
    %40 = vector.broadcast %39 : vector<256x1xf32> to vector<256x128xf32>
    %41 = arith.divf %37, %40 : vector<256x128xf32>
    %42 = vector.extract_strided_slice %41 {offsets = [0, 0], sizes = [256, 4], strides = [1, 1]} : vector<256x128xf32> to vector<256x4xf32>
    %c0_23 = arith.constant 0 : index
    %c0_24 = arith.constant 0 : index
    %43 = vector.load %arg8[%c0_23, %c0_24] : memref<256x4xf32, #tpu.memory_space<vmem>>, vector<256x4xf32>
    tpu.vector_store %arg8[%c0_23, %c0_24], %42 {strides = array<i32>} : memref<256x4xf32, #tpu.memory_space<vmem>>, vector<256x4xf32>,
    return
  }
  func.func @transform_0(%arg0: i32) -> (i32, i32) {
    %c0_i32 = arith.constant 0 : i32
    %c0_i32_0 = arith.constant 0 : i32
    return %arg0, %c0_i32 : i32, i32
  }
  func.func @transform_1(%arg0: i32) -> (i32, i32) {
    %c0_i32 = arith.constant 0 : i32
    %c0_i32_0 = arith.constant 0 : i32
    %c0_i32_1 = arith.constant 0 : i32
    return %c0_i32, %c0_i32_0 : i32, i32
  }
  func.func @transform_2(%arg0: i32) -> (i32, i32) {
    %c0_i32 = arith.constant 0 : i32
    %c0_i32_0 = arith.constant 0 : i32
    %c0_i32_1 = arith.constant 0 : i32
    return %c0_i32, %c0_i32_0 : i32, i32
  }
  func.func @transform_3(%arg0: i32) -> (i32, i32) {
    %c0_i32 = arith.constant 0 : i32
    %c0_i32_0 = arith.constant 0 : i32
    %c0_i32_1 = arith.constant 0 : i32
    return %c0_i32, %c0_i32_0 : i32, i32
  }
  func.func @transform_4(%arg0: i32) -> (i32, i32) {
    %c0_i32 = arith.constant 0 : i32
    %c0_i32_0 = arith.constant 0 : i32
    %c0_i32_1 = arith.constant 0 : i32
    return %c0_i32, %c0_i32_0 : i32, i32
  }
  func.func @transform_5(%arg0: i32) -> (i32, i32) {
    %c0_i32 = arith.constant 0 : i32
    %c0_i32_0 = arith.constant 0 : i32
    %c0_i32_1 = arith.constant 0 : i32
    return %c0_i32, %c0_i32_0 : i32, i32
  }
  func.func @transform_6(%arg0: i32) -> (i32, i32) {
    %c0_i32 = arith.constant 0 : i32
    %c0_i32_0 = arith.constant 0 : i32
    %c0_i32_1 = arith.constant 0 : i32
    return %c0_i32, %c0_i32_0 : i32, i32
  }
  func.func @transform_7(%arg0: i32) -> (i32, i32) {
    %c0_i32 = arith.constant 0 : i32
    %c0_i32_0 = arith.constant 0 : i32
    return %arg0, %c0_i32 : i32, i32
  }
}

</mosaic_0001>

<llo_original>
// kernel: tpu_custom_call.1
$region0: #{tpu_custom_call.1}
  #allocation0 [shape = 'u32[]', space=smem, size = 0x4, offset = 0x4, fixed_abs, tag = 'smem constant byte address 0x4 - core index']
  #allocation1 [shape = 'u32[144,128]{1,0:T(1,128)}', space=vmem, size = 0x12000, scoped, tag = 'internal scratch']
  %s0 = inlined_call_operand.vmem [shape: f32[512,4], index: 0, kind: input, shape index: {}]
  %s1 = inlined_call_operand.vmem [shape: bf16[4,32], index: 1, kind: input, shape index: {}]
  %s2 = inlined_call_operand.vmem [shape: f32[1,32], index: 2, kind: input, shape index: {}]
  %s3 = inlined_call_operand.vmem [shape: bf16[32,32], index: 3, kind: input, shape index: {}]
  %s4 = inlined_call_operand.vmem [shape: f32[1,32], index: 4, kind: input, shape index: {}]
  %s5 = inlined_call_operand.vmem [shape: bf16[32,128], index: 5, kind: input, shape index: {}]
  %s6 = inlined_call_operand.vmem [shape: f32[1,128], index: 6, kind: input, shape index: {}]
  %s7 = inlined_call_operand.vmem [shape: f32[512,4], index: 7, kind: output, shape index: {}]
  %s8 = sld [smem:[#allocation0]]
  $region61: #{tpu_custom_call.1} parent=0
    _
  %s10 = ssub.s32 1, %s8
  %s11 = scalar_select 0, %s10, %s8
  loop: start=0, step=1, limit=4
  $region2: #{tpu_custom_call.1} parent=0 // loop_pre_header
    _
  $region3: #{tpu_custom_call.1} parent=0 // loop_header
    %s13 = sphi 0, %s17
    %p14 = scmp.ge.s32.totalorder %s13, 4
    %s23 = sphi 0, %s25
    %s26 = sphi 0, %s23
    %s27 = sphi 0, %s26
    %s43 = sphi 0, %s27
    %s47 = sphi 0, %s47
    %s49 = sphi 0, %s47
    %s50 = sphi 0, %s49
    %s64 = sphi 0, %s50
    %s68 = sphi 0, %s68
    %s70 = sphi 0, %s68
    %s71 = sphi 0, %s70
    %s85 = sphi 0, %s71
    %s89 = sphi 0, %s89
    %s91 = sphi 0, %s89
    %s92 = sphi 0, %s91
    %s106 = sphi 0, %s92
    %s110 = sphi 0, %s110
    %s112 = sphi 0, %s110
    %s113 = sphi 0, %s112
    %s127 = sphi 0, %s113
    %s131 = sphi 0, %s131
    %s133 = sphi 0, %s131
    %s134 = sphi 0, %s133
    %s148 = sphi 0, %s134
    %s152 = sphi 0, %s152
    %s154 = sphi 0, %s152
    %s155 = sphi 0, %s154
    %s169 = sphi 0, %s155
    %s175 = sphi 0, %s177
    %s178 = sphi 0, %s175
    %s179 = sphi 0, %s178
    %s195 = sphi 0, %s179
  $region4: #{tpu_custom_call.1} parent=0 // loop_header_branch
    %16 = sbr.rel (%p14) target = $region8
  $region5: #{tpu_custom_call.1} parent=0 // loop_body
    %s18 = ssub.s32 %s13, 1
    %s19 = ssub.s32 %s13, 2
    %s20 = sadd.s32 %s13, 1
    %s21 = ssub.s32 %s13, %s20
    %p22 = scmp.eq.s32.totalorder %s21, 0
    %s24 = sadd.s32 %s23, 1
    %s25 = scalar_select %p22, %s23, %s24
    %p28 = pneg %p22
    %p29 = scmp.eq.s32.totalorder %s13, 1
    %p30 = por %p28, %p29
    %p31 = scmp.ne.s32.totalorder %s23, %s26
    %p32 = scmp.eq.s32.totalorder %s13, 0
    %p33 = por %p31, %p32
    %p34 = scmp.ne.s32.totalorder %s23, %s26
    %p35 = scmp.eq.s32.totalorder %s18, 1
    %p36 = por %p34, %p35
    %p37 = scmp.ne.s32.totalorder %s26, %s27
    %p38 = scmp.eq.s32.totalorder %s18, 0
    %p39 = por %p37, %p38
    %p40 = scmp.ne.s32.totalorder %s26, %s27
    %p41 = scmp.eq.s32.totalorder %s19, 1
    %p42 = por %p40, %p41
    %p44 = scmp.ne.s32.totalorder %s27, %s43
    %p45 = scmp.eq.s32.totalorder %s19, 0
    %p46 = por %p44, %p45
    %s48 = sadd.s32 %s47, 1
    %p51 = scmp.eq.s32.totalorder %s13, 1
    %p52 = scmp.ne.s32.totalorder %s47, %s49
    %p53 = scmp.eq.s32.totalorder %s13, 0
    %p54 = por %p52, %p53
    %p55 = scmp.ne.s32.totalorder %s47, %s49
    %p56 = scmp.eq.s32.totalorder %s18, 1
    %p57 = por %p55, %p56
    %p58 = scmp.ne.s32.totalorder %s49, %s50
    %p59 = scmp.eq.s32.totalorder %s18, 0
    %p60 = por %p58, %p59
    %p61 = scmp.ne.s32.totalorder %s49, %s50
    %p62 = scmp.eq.s32.totalorder %s19, 1
    %p63 = por %p61, %p62
    %p65 = scmp.ne.s32.totalorder %s50, %s64
    %p66 = scmp.eq.s32.totalorder %s19, 0
    %p67 = por %p65, %p66
    %s69 = sadd.s32 %s68, 1
    %p72 = scmp.eq.s32.totalorder %s13, 1
    %p73 = scmp.ne.s32.totalorder %s68, %s70
    %p74 = scmp.eq.s32.totalorder %s13, 0
    %p75 = por %p73, %p74
    %p76 = scmp.ne.s32.totalorder %s68, %s70
    %p77 = scmp.eq.s32.totalorder %s18, 1
    %p78 = por %p76, %p77
    %p79 = scmp.ne.s32.totalorder %s70, %s71
    %p80 = scmp.eq.s32.totalorder %s18, 0
    %p81 = por %p79, %p80
    %p82 = scmp.ne.s32.totalorder %s70, %s71
    %p83 = scmp.eq.s32.totalorder %s19, 1
    %p84 = por %p82, %p83
    %p86 = scmp.ne.s32.totalorder %s71, %s85
    %p87 = scmp.eq.s32.totalorder %s19, 0
    %p88 = por %p86, %p87
    %s90 = sadd.s32 %s89, 1
    %p93 = scmp.eq.s32.totalorder %s13, 1
    %p94 = scmp.ne.s32.totalorder %s89, %s91
    %p95 = scmp.eq.s32.totalorder %s13, 0
    %p96 = por %p94, %p95
    %p97 = scmp.ne.s32.totalorder %s89, %s91
    %p98 = scmp.eq.s32.totalorder %s18, 1
    %p99 = por %p97, %p98
    %p100 = scmp.ne.s32.totalorder %s91, %s92
    %p101 = scmp.eq.s32.totalorder %s18, 0
    %p102 = por %p100, %p101
    %p103 = scmp.ne.s32.totalorder %s91, %s92
    %p104 = scmp.eq.s32.totalorder %s19, 1
    %p105 = por %p103, %p104
    %p107 = scmp.ne.s32.totalorder %s92, %s106
    %p108 = scmp.eq.s32.totalorder %s19, 0
    %p109 = por %p107, %p108
    %s111 = sadd.s32 %s110, 1
    %p114 = scmp.eq.s32.totalorder %s13, 1
    %p115 = scmp.ne.s32.totalorder %s110, %s112
    %p116 = scmp.eq.s32.totalorder %s13, 0
    %p117 = por %p115, %p116
    %p118 = scmp.ne.s32.totalorder %s110, %s112
    %p119 = scmp.eq.s32.totalorder %s18, 1
    %p120 = por %p118, %p119
    %p121 = scmp.ne.s32.totalorder %s112, %s113
    %p122 = scmp.eq.s32.totalorder %s18, 0
    %p123 = por %p121, %p122
    %p124 = scmp.ne.s32.totalorder %s112, %s113
    %p125 = scmp.eq.s32.totalorder %s19, 1
    %p126 = por %p124, %p125
    %p128 = scmp.ne.s32.totalorder %s113, %s127
    %p129 = scmp.eq.s32.totalorder %s19, 0
    %p130 = por %p128, %p129
    %s132 = sadd.s32 %s131, 1
    %p135 = scmp.eq.s32.totalorder %s13, 1
    %p136 = scmp.ne.s32.totalorder %s131, %s133
    %p137 = scmp.eq.s32.totalorder %s13, 0
    %p138 = por %p136, %p137
    %p139 = scmp.ne.s32.totalorder %s131, %s133
    %p140 = scmp.eq.s32.totalorder %s18, 1
    %p141 = por %p139, %p140
    %p142 = scmp.ne.s32.totalorder %s133, %s134
    %p143 = scmp.eq.s32.totalorder %s18, 0
    %p144 = por %p142, %p143
    %p145 = scmp.ne.s32.totalorder %s133, %s134
    %p146 = scmp.eq.s32.totalorder %s19, 1
    %p147 = por %p145, %p146
    %p149 = scmp.ne.s32.totalorder %s134, %s148
    %p150 = scmp.eq.s32.totalorder %s19, 0
    %p151 = por %p149, %p150
    %s153 = sadd.s32 %s152, 1
    %p156 = scmp.eq.s32.totalorder %s13, 1
    %p157 = scmp.ne.s32.totalorder %s152, %s154
    %p158 = scmp.eq.s32.totalorder %s13, 0
    %p159 = por %p157, %p158
    %p160 = scmp.ne.s32.totalorder %s152, %s154
    %p161 = scmp.eq.s32.totalorder %s18, 1
    %p162 = por %p160, %p161
    %p163 = scmp.ne.s32.totalorder %s154, %s155
    %p164 = scmp.eq.s32.totalorder %s18, 0
    %p165 = por %p163, %p164
    %p166 = scmp.ne.s32.totalorder %s154, %s155
    %p167 = scmp.eq.s32.totalorder %s19, 1
    %p168 = por %p166, %p167
    %p170 = scmp.ne.s32.totalorder %s155, %s169
    %p171 = scmp.eq.s32.totalorder %s19, 0
    %p172 = por %p170, %p171
    %s173 = ssub.s32 %s13, %s20
    %p174 = scmp.eq.s32.totalorder %s173, 0
    %s176 = sadd.s32 %s175, 1
    %s177 = scalar_select %p174, %s175, %s176
    %p180 = pneg %p174
    %p181 = scmp.eq.s32.totalorder %s13, 1
    %p182 = por %p180, %p181
    %p183 = scmp.ne.s32.totalorder %s175, %s178
    %p184 = scmp.eq.s32.totalorder %s13, 0
    %p185 = por %p183, %p184
    %p186 = scmp.ne.s32.totalorder %s175, %s178
    %p187 = scmp.eq.s32.totalorder %s18, 1
    %p188 = por %p186, %p187
    %p189 = scmp.ne.s32.totalorder %s178, %s179
    %p190 = scmp.eq.s32.totalorder %s18, 0
    %p191 = por %p189, %p190
    %p192 = scmp.ne.s32.totalorder %s178, %s179
    %p193 = scmp.eq.s32.totalorder %s19, 1
    %p194 = por %p192, %p193
    %p196 = scmp.ne.s32.totalorder %s179, %s195
    %p197 = scmp.eq.s32.totalorder %s19, 0
    %p198 = por %p196, %p197
    %p199 = scmp.le.s32.totalorder 1, %s13
    %p200 = scmp.lt.s32.totalorder %s13, 3
    %p201 = pnand %p199, %p200
    %p202 = pneg %p201
    // Predicated region
    $region9: #{tpu_custom_call.1} parent=5 // pred_check
      _
    $region10: #{tpu_custom_call.1} parent=5 // pred_check_branch
      %204 = sbr.rel (%p201) target = $region12
    $region11: #{tpu_custom_call.1} parent=5 // pred_region
      %s205 = ssub.s32 %s13, 1
      // Predicated region
      $region13: #{tpu_custom_call.1} parent=11 // pred_check
        %p206 = pneg %p60
      $region14: #{tpu_custom_call.1} parent=11 // pred_check_branch
        %208 = sbr.rel (%p206) target = $region16
      $region15: #{tpu_custom_call.1} parent=11 // pred_region
        _
      $region16: #{tpu_custom_call.1} parent=11 // pred_fallthru
        _
      // Predicated region
      $region17: #{tpu_custom_call.1} parent=11 // pred_check
        %p209 = pneg %p81
      $region18: #{tpu_custom_call.1} parent=11 // pred_check_branch
        %211 = sbr.rel (%p209) target = $region20
      $region19: #{tpu_custom_call.1} parent=11 // pred_region
        _
      $region20: #{tpu_custom_call.1} parent=11 // pred_fallthru
        _
      // Predicated region
      $region21: #{tpu_custom_call.1} parent=11 // pred_check
        %p212 = pneg %p102
      $region22: #{tpu_custom_call.1} parent=11 // pred_check_branch
        %214 = sbr.rel (%p212) target = $region24
      $region23: #{tpu_custom_call.1} parent=11 // pred_region
        _
      $region24: #{tpu_custom_call.1} parent=11 // pred_fallthru
        _
      // Predicated region
      $region25: #{tpu_custom_call.1} parent=11 // pred_check
        %p215 = pneg %p123
      $region26: #{tpu_custom_call.1} parent=11 // pred_check_branch
        %217 = sbr.rel (%p215) target = $region28
      $region27: #{tpu_custom_call.1} parent=11 // pred_region
        _
      $region28: #{tpu_custom_call.1} parent=11 // pred_fallthru
        _
      // Predicated region
      $region29: #{tpu_custom_call.1} parent=11 // pred_check
        %p218 = pneg %p144
      $region30: #{tpu_custom_call.1} parent=11 // pred_check_branch
        %220 = sbr.rel (%p218) target = $region32
      $region31: #{tpu_custom_call.1} parent=11 // pred_region
        _
      $region32: #{tpu_custom_call.1} parent=11 // pred_fallthru
        _
      // Predicated region
      $region33: #{tpu_custom_call.1} parent=11 // pred_check
        %p221 = pneg %p165
      $region34: #{tpu_custom_call.1} parent=11 // pred_check_branch
        %223 = sbr.rel (%p221) target = $region36
      $region35: #{tpu_custom_call.1} parent=11 // pred_region
        _
      $region36: #{tpu_custom_call.1} parent=11 // pred_fallthru
        _
    $region12: #{tpu_custom_call.1} parent=5 // pred_fallthru
      _
    %p224 = scmp.lt.s32.totalorder %s13, 2
    // Predicated region
    $region37: #{tpu_custom_call.1} parent=5 // pred_check
      %p225 = pneg %p224
    $region38: #{tpu_custom_call.1} parent=5 // pred_check_branch
      %227 = sbr.rel (%p225) target = $region40
    $region39: #{tpu_custom_call.1} parent=5 // pred_region
      // Predicated region
      $region41: #{tpu_custom_call.1} parent=39 // pred_check
        %p228 = pneg %p33
      $region42: #{tpu_custom_call.1} parent=39 // pred_check_branch
        %230 = sbr.rel (%p228) target = $region44
      $region43: #{tpu_custom_call.1} parent=39 // pred_region
        %s231 = smul.u32 32, %s13
        %p232 = scmp.lt.s32.totalorder %s231, 63
        %s233 = scalar_select %p232, %s231, 63
        %s234 = smul.addr %s233, 8
        %s235 = scalar_lea.vmem %s0, %s234
        %s236 = smul.u32 32, %s13
      $region44: #{tpu_custom_call.1} parent=39 // pred_fallthru
        _
    $region40: #{tpu_custom_call.1} parent=5 // pred_fallthru
      _
    %p237 = scmp.le.s32.totalorder 1, %s13
    %p238 = scmp.lt.s32.totalorder %s13, 3
    %p239 = pnand %p237, %p238
    %p240 = pneg %p239
    // Predicated region
    $region45: #{tpu_custom_call.1} parent=5 // pred_check
      _
    $region46: #{tpu_custom_call.1} parent=5 // pred_check_branch
      %242 = sbr.rel (%p239) target = $region48
    $region47: #{tpu_custom_call.1} parent=5 // pred_region
      %s243 = ssub.s32 %s13, 1
      %s244 = smul.u32 32, %s18
      %p245 = scmp.lt.s32.totalorder %s244, 63
      %s246 = scalar_select %p245, %s244, 63
      %s247 = smul.addr %s246, 8
      %s248 = scalar_lea.vmem %s0, %s247
      %p249 = pneg %p39
      %p250 = pneg %p36
      %p251 = pneg %p60
      %p252 = pneg %p57
      %p253 = pneg %p81
      %p254 = pneg %p78
      %p255 = pneg %p102
      %p256 = pneg %p99
      %p257 = pneg %p123
      %p258 = pneg %p120
      %p259 = pneg %p144
      %p260 = pneg %p141
      %p261 = pneg %p165
      %p262 = pneg %p162
      %p263 = pneg %p191
      %p264 = pneg %p188
      %s265 = smul.u32 32, %s18
      %p266 = scmp.lt.s32.totalorder %s265, 63
      %s267 = scalar_select %p266, %s265, 63
      %s268 = smul.addr %s267, 8
      %s269 = scalar_lea.vmem %s7, %s268
      %s270 = smul.u32 32, %s18
      %p271 = scmp.lt.s32.totalorder %s270, 63
      %s272 = scalar_select %p271, %s270, 63
      %s273 = smul.addr %s272, 8
      %s274 = scalar_lea.vmem %s0, %s273
      %s275 = smul.u32 32, %s18
      %s276 = smul.u32 32, %s18
      %p277 = scmp.lt.s32.totalorder %s276, 63
      %s278 = scalar_select %p277, %s276, 63
      %s279 = smul.addr %s278, 8
      %s280 = scalar_lea.vmem %s7, %s279
      %s281 = smul.u32 32, %s18
      %v283 = vld [vmem:[%s274] sm:$0xff]
      %v284 = vld [vmem:[%s274 + $0x8] sm:$0xff]
      %v285 = vld [vmem:[%s274 + $0x10] sm:$0xff]
      %v286 = vld [vmem:[%s274 + $0x18] sm:$0xff]
      %v287 = vld [vmem:[%s274 + $0x20] sm:$0xff]
      %v288 = vld [vmem:[%s274 + $0x28] sm:$0xff]
      %v289 = vld [vmem:[%s274 + $0x30] sm:$0xff]
      %v290 = vld [vmem:[%s274 + $0x38] sm:$0xff]
      %v291 = vld [vmem:[%s274 + $0x40] sm:$0xff]
      %v292 = vld [vmem:[%s274 + $0x48] sm:$0xff]
      %v293 = vld [vmem:[%s274 + $0x50] sm:$0xff]
      %v294 = vld [vmem:[%s274 + $0x58] sm:$0xff]
      %v295 = vld [vmem:[%s274 + $0x60] sm:$0xff]
      %v296 = vld [vmem:[%s274 + $0x68] sm:$0xff]
      %v297 = vld [vmem:[%s274 + $0x70] sm:$0xff]
      %v298 = vld [vmem:[%s274 + $0x78] sm:$0xff]
      %v299 = vld [vmem:[%s274 + $0x80] sm:$0xff]
      %v300 = vld [vmem:[%s274 + $0x88] sm:$0xff]
      %v301 = vld [vmem:[%s274 + $0x90] sm:$0xff]
      %v302 = vld [vmem:[%s274 + $0x98] sm:$0xff]
      %v303 = vld [vmem:[%s274 + $0xa0] sm:$0xff]
      %v304 = vld [vmem:[%s274 + $0xa8] sm:$0xff]
      %v305 = vld [vmem:[%s274 + $0xb0] sm:$0xff]
      %v306 = vld [vmem:[%s274 + $0xb8] sm:$0xff]
      %v307 = vld [vmem:[%s274 + $0xc0] sm:$0xff]
      %v308 = vld [vmem:[%s274 + $0xc8] sm:$0xff]
      %v309 = vld [vmem:[%s274 + $0xd0] sm:$0xff]
      %v310 = vld [vmem:[%s274 + $0xd8] sm:$0xff]
      %v311 = vld [vmem:[%s274 + $0xe0] sm:$0xff]
      %v312 = vld [vmem:[%s274 + $0xe8] sm:$0xff]
      %v313 = vld [vmem:[%s274 + $0xf0] sm:$0xff]
      %v314 = vld [vmem:[%s274 + $0xf8] sm:$0xff]
      %v315 = vpack.c.bf16 %v284, %v283
      %v316 = vpack.c.bf16 %v286, %v285
      %v317 = vpack.c.bf16 %v288, %v287
      %v318 = vpack.c.bf16 %v290, %v289
      %v319 = vpack.c.bf16 %v292, %v291
      %v320 = vpack.c.bf16 %v294, %v293
      %v321 = vpack.c.bf16 %v296, %v295
      %v322 = vpack.c.bf16 %v298, %v297
      %v323 = vpack.c.bf16 %v300, %v299
      %v324 = vpack.c.bf16 %v302, %v301
      %v325 = vpack.c.bf16 %v304, %v303
      %v326 = vpack.c.bf16 %v306, %v305
      %v327 = vpack.c.bf16 %v308, %v307
      %v328 = vpack.c.bf16 %v310, %v309
      %v329 = vpack.c.bf16 %v312, %v311
      %v330 = vpack.c.bf16 %v314, %v313
      %v331 = vld [vmem:[%s1] sm:$0x3]
      %v332 = vld [vmem:[%s2] sm:$0x1]
      %v334 = vlaneseq
      %v335 = vshrl.u32 %v334, 7
      %v336 = vsub.s32 0, %v335
      %v337 = vrot.slane %v332, %v336
      %vm339 = vcmask 31744
      %v341 = vsel %vm339, %v315, 0
      %v344 = vsel %vm339, %v316, 0
      %v347 = vsel %vm339, %v317, 0
      %v350 = vsel %vm339, %v318, 0
      %v353 = vsel %vm339, %v319, 0
      %v356 = vsel %vm339, %v320, 0
      %v359 = vsel %vm339, %v321, 0
      %v362 = vsel %vm339, %v322, 0
      %v365 = vsel %vm339, %v323, 0
      %v368 = vsel %vm339, %v324, 0
      %v371 = vsel %vm339, %v325, 0
      %v374 = vsel %vm339, %v326, 0
      %v377 = vsel %vm339, %v327, 0
      %v380 = vsel %vm339, %v328, 0
      %v383 = vsel %vm339, %v329, 0
      %v386 = vsel %vm339, %v330, 0
      %vm388 = vcmask 1041408
      %v390 = vsel %vm388, %v331, 0
      %392 = vmatprep.subr.bf16.mxu0 0
      %393 = vmatpush1.bf16.msra.mxu0 0
      %394 = vmatprep.subr.bf16.mxu0 0
      %395 = vmatpush1.bf16.msra.mxu0 0
      %396 = vmatprep.subr.bf16.mxu0 0
      %397 = vmatpush1.bf16.msra.mxu0 0
      %398 = vmatprep.subr.bf16.mxu0 0
      %399 = vmatpush1.bf16.msra.mxu0 0
      %400 = vmatprep.subr.bf16.mxu0 0
      %401 = vmatpush1.bf16.msra.mxu0 0
      %402 = vmatprep.subr.bf16.mxu0 0
      %403 = vmatpush1.bf16.msra.mxu0 0
      %404 = vmatprep.subr.bf16.mxu0 0
      %405 = vmatpush1.bf16.msra.mxu0 0
      %406 = vmatprep.subr.bf16.mxu0 0
      %407 = vmatpush1.bf16.msra.mxu0 %v390
      %408 = vmatprep.subr.bf16.mxu0 0
      %409 = vmatpush2.bf16.msra.mxu0 0
      %410 = vmatprep.subr.bf16.mxu0 0
      %411 = vmatpush2.bf16.msra.mxu0 0
      %412 = vmatprep.subr.bf16.mxu0 0
      %413 = vmatpush2.bf16.msra.mxu0 0
      %414 = vmatprep.subr.bf16.mxu0 0
      %415 = vmatpush2.bf16.msra.mxu0 0
      %416 = vmatprep.subr.bf16.mxu0 0
      %417 = vmatpush2.bf16.msra.mxu0 0
      %418 = vmatprep.subr.bf16.mxu0 0
      %419 = vmatpush2.bf16.msra.mxu0 0
      %420 = vmatprep.subr.bf16.mxu0 0
      %421 = vmatpush2.bf16.msra.mxu0 0
      %422 = vmatprep.subr.bf16.mxu0 0
      %423 = vmatpush2.bf16.msra.mxu0 0
      %424 = vmatprep.mubr.bf16.mxu0 0
      %425 = vmatmul.mubr.bf16.gmra.mxu0 %v341
      %v426 = vpop.f32.mrf.mxu0
      %v427 = vadd.f32 %v337, %v426
      %v428 = vpop.f32.mrf.mxu0
      %v429 = vpop.f32.mrf.mxu0
      %v430 = vadd.f32 %v337, %v429
      %v431 = vpop.f32.mrf.mxu0
      %432 = vmatprep.mubr.bf16.mxu0 0
      %433 = vmatmul.mubr.bf16.gmra.mxu0 %v344
      %v434 = vpop.f32.mrf.mxu0
      %v435 = vadd.f32 %v337, %v434
      %v436 = vpop.f32.mrf.mxu0
      %v437 = vpop.f32.mrf.mxu0
      %v438 = vadd.f32 %v337, %v437
      %v439 = vpop.f32.mrf.mxu0
      %440 = vmatprep.mubr.bf16.mxu0 0
      %441 = vmatmul.mubr.bf16.gmra.mxu0 %v347
      %v442 = vpop.f32.mrf.mxu0
      %v443 = vadd.f32 %v337, %v442
      %v444 = vpop.f32.mrf.mxu0
      %v445 = vpop.f32.mrf.mxu0
      %v446 = vadd.f32 %v337, %v445
      %v447 = vpop.f32.mrf.mxu0
      %448 = vmatprep.mubr.bf16.mxu0 0
      %449 = vmatmul.mubr.bf16.gmra.mxu0 %v350
      %v450 = vpop.f32.mrf.mxu0
      %v451 = vadd.f32 %v337, %v450
      %v452 = vpop.f32.mrf.mxu0
      %v453 = vpop.f32.mrf.mxu0
      %v454 = vadd.f32 %v337, %v453
      %v455 = vpop.f32.mrf.mxu0
      %456 = vmatprep.mubr.bf16.mxu0 0
      %457 = vmatmul.mubr.bf16.gmra.mxu0 %v353
      %v458 = vpop.f32.mrf.mxu0
      %v459 = vadd.f32 %v337, %v458
      %v460 = vpop.f32.mrf.mxu0
      %v461 = vpop.f32.mrf.mxu0
      %v462 = vadd.f32 %v337, %v461
      %v463 = vpop.f32.mrf.mxu0
      %464 = vmatprep.mubr.bf16.mxu0 0
      %465 = vmatmul.mubr.bf16.gmra.mxu0 %v356
      %v466 = vpop.f32.mrf.mxu0
      %v467 = vadd.f32 %v337, %v466
      %v468 = vpop.f32.mrf.mxu0
      %v469 = vpop.f32.mrf.mxu0
      %v470 = vadd.f32 %v337, %v469
      %v471 = vpop.f32.mrf.mxu0
      %472 = vmatprep.mubr.bf16.mxu0 0
      %473 = vmatmul.mubr.bf16.gmra.mxu0 %v359
      %v474 = vpop.f32.mrf.mxu0
      %v475 = vadd.f32 %v337, %v474
      %v476 = vpop.f32.mrf.mxu0
      %v477 = vpop.f32.mrf.mxu0
      %v478 = vadd.f32 %v337, %v477
      %v479 = vpop.f32.mrf.mxu0
      %480 = vmatprep.mubr.bf16.mxu0 0
      %481 = vmatmul.mubr.bf16.gmra.mxu0 %v362
      %v482 = vpop.f32.mrf.mxu0
      %v483 = vadd.f32 %v337, %v482
      %v484 = vpop.f32.mrf.mxu0
      %v485 = vpop.f32.mrf.mxu0
      %v486 = vadd.f32 %v337, %v485
      %v487 = vpop.f32.mrf.mxu0
      %488 = vmatprep.mubr.bf16.mxu0 0
      %489 = vmatmul.mubr.bf16.gmra.mxu0 %v365
      %v490 = vpop.f32.mrf.mxu0
      %v491 = vadd.f32 %v337, %v490
      %v492 = vpop.f32.mrf.mxu0
      %v493 = vpop.f32.mrf.mxu0
      %v494 = vadd.f32 %v337, %v493
      %v495 = vpop.f32.mrf.mxu0
      %496 = vmatprep.mubr.bf16.mxu0 0
      %497 = vmatmul.mubr.bf16.gmra.mxu0 %v368
      %v498 = vpop.f32.mrf.mxu0
      %v499 = vadd.f32 %v337, %v498
      %v500 = vpop.f32.mrf.mxu0
      %v501 = vpop.f32.mrf.mxu0
      %v502 = vadd.f32 %v337, %v501
      %v503 = vpop.f32.mrf.mxu0
      %504 = vmatprep.mubr.bf16.mxu0 0
      %505 = vmatmul.mubr.bf16.gmra.mxu0 %v371
      %v506 = vpop.f32.mrf.mxu0
      %v507 = vadd.f32 %v337, %v506
      %v508 = vpop.f32.mrf.mxu0
      %v509 = vpop.f32.mrf.mxu0
      %v510 = vadd.f32 %v337, %v509
      %v511 = vpop.f32.mrf.mxu0
      %512 = vmatprep.mubr.bf16.mxu0 0
      %513 = vmatmul.mubr.bf16.gmra.mxu0 %v374
      %v514 = vpop.f32.mrf.mxu0
      %v515 = vadd.f32 %v337, %v514
      %v516 = vpop.f32.mrf.mxu0
      %v517 = vpop.f32.mrf.mxu0
      %v518 = vadd.f32 %v337, %v517
      %v519 = vpop.f32.mrf.mxu0
      %520 = vmatprep.mubr.bf16.mxu0 0
      %521 = vmatmul.mubr.bf16.gmra.mxu0 %v377
      %v522 = vpop.f32.mrf.mxu0
      %v523 = vadd.f32 %v337, %v522
      %v524 = vpop.f32.mrf.mxu0
      %v525 = vpop.f32.mrf.mxu0
      %v526 = vadd.f32 %v337, %v525
      %v527 = vpop.f32.mrf.mxu0
      %528 = vmatprep.mubr.bf16.mxu0 0
      %529 = vmatmul.mubr.bf16.gmra.mxu0 %v380
      %v530 = vpop.f32.mrf.mxu0
      %v531 = vadd.f32 %v337, %v530
      %v532 = vpop.f32.mrf.mxu0
      %v533 = vpop.f32.mrf.mxu0
      %v534 = vadd.f32 %v337, %v533
      %v535 = vpop.f32.mrf.mxu0
      %536 = vmatprep.mubr.bf16.mxu0 0
      %537 = vmatmul.mubr.bf16.gmra.mxu0 %v383
      %v538 = vpop.f32.mrf.mxu0
      %v539 = vadd.f32 %v337, %v538
      %v540 = vpop.f32.mrf.mxu0
      %v541 = vpop.f32.mrf.mxu0
      %v542 = vadd.f32 %v337, %v541
      %v543 = vpop.f32.mrf.mxu0
      %544 = vmatprep.mubr.bf16.mxu0 0
      %545 = vmatmul.mubr.bf16.gmra.mxu0 %v386
      %v546 = vpop.f32.mrf.mxu0
      %v547 = vadd.f32 %v337, %v546
      %v548 = vpop.f32.mrf.mxu0
      %v549 = vpop.f32.mrf.mxu0
      %v550 = vadd.f32 %v337, %v549
      %v551 = vpop.f32.mrf.mxu0
      %552 = vdwg.mxu0
      %v553 = vmul.f32 %v427, 0.5
      %v554 = vmul.f32 %v430, 0.5
      %v555 = vmul.f32 %v435, 0.5
      %v556 = vmul.f32 %v438, 0.5
      %v557 = vmul.f32 %v443, 0.5
      %v558 = vmul.f32 %v446, 0.5
      %v559 = vmul.f32 %v451, 0.5
      %v560 = vmul.f32 %v454, 0.5
      %v561 = vmul.f32 %v459, 0.5
      %v562 = vmul.f32 %v462, 0.5
      %v563 = vmul.f32 %v467, 0.5
      %v564 = vmul.f32 %v470, 0.5
      %v565 = vmul.f32 %v475, 0.5
      %v566 = vmul.f32 %v478, 0.5
      %v567 = vmul.f32 %v483, 0.5
      %v568 = vmul.f32 %v486, 0.5
      %v569 = vmul.f32 %v491, 0.5
      %v570 = vmul.f32 %v494, 0.5
      %v571 = vmul.f32 %v499, 0.5
      %v572 = vmul.f32 %v502, 0.5
      %v573 = vmul.f32 %v507, 0.5
      %v574 = vmul.f32 %v510, 0.5
      %v575 = vmul.f32 %v515, 0.5
      %v576 = vmul.f32 %v518, 0.5
      %v577 = vmul.f32 %v523, 0.5
      %v578 = vmul.f32 %v526, 0.5
      %v579 = vmul.f32 %v531, 0.5
      %v580 = vmul.f32 %v534, 0.5
      %v581 = vmul.f32 %v539, 0.5
      %v582 = vmul.f32 %v542, 0.5
      %v583 = vmul.f32 %v547, 0.5
      %v584 = vmul.f32 %v550, 0.5
      %v585 = vtanh.pop %v553
      %v586 = vtanh.pop %v554
      %v587 = vtanh.pop %v555
      %v588 = vtanh.pop %v556
      %v589 = vtanh.pop %v557
      %v590 = vtanh.pop %v558
      %v591 = vtanh.pop %v559
      %v592 = vtanh.pop %v560
      %v593 = vtanh.pop %v561
      %v594 = vtanh.pop %v562
      %v595 = vtanh.pop %v563
      %v596 = vtanh.pop %v564
      %v597 = vtanh.pop %v565
      %v598 = vtanh.pop %v566
      %v599 = vtanh.pop %v567
      %v600 = vtanh.pop %v568
      %v601 = vtanh.pop %v569
      %v602 = vtanh.pop %v570
      %v603 = vtanh.pop %v571
      %v604 = vtanh.pop %v572
      %v605 = vtanh.pop %v573
      %v606 = vtanh.pop %v574
      %v607 = vtanh.pop %v575
      %v608 = vtanh.pop %v576
      %v609 = vtanh.pop %v577
      %v610 = vtanh.pop %v578
      %v611 = vtanh.pop %v579
      %v612 = vtanh.pop %v580
      %v613 = vtanh.pop %v581
      %v614 = vtanh.pop %v582
      %v615 = vtanh.pop %v583
      %v616 = vtanh.pop %v584
      %v617 = vmul.f32 %v585, 0.5
      %v618 = vmul.f32 %v586, 0.5
      %v619 = vmul.f32 %v587, 0.5
      %v620 = vmul.f32 %v588, 0.5
      %v621 = vmul.f32 %v589, 0.5
      %v622 = vmul.f32 %v590, 0.5
      %v623 = vmul.f32 %v591, 0.5
      %v624 = vmul.f32 %v592, 0.5
      %v625 = vmul.f32 %v593, 0.5
      %v626 = vmul.f32 %v594, 0.5
      %v627 = vmul.f32 %v595, 0.5
      %v628 = vmul.f32 %v596, 0.5
      %v629 = vmul.f32 %v597, 0.5
      %v630 = vmul.f32 %v598, 0.5
      %v631 = vmul.f32 %v599, 0.5
      %v632 = vmul.f32 %v600, 0.5
      %v633 = vmul.f32 %v601, 0.5
      %v634 = vmul.f32 %v602, 0.5
      %v635 = vmul.f32 %v603, 0.5
      %v636 = vmul.f32 %v604, 0.5
      %v637 = vmul.f32 %v605, 0.5
      %v638 = vmul.f32 %v606, 0.5
      %v639 = vmul.f32 %v607, 0.5
      %v640 = vmul.f32 %v608, 0.5
      %v641 = vmul.f32 %v609, 0.5
      %v642 = vmul.f32 %v610, 0.5
      %v643 = vmul.f32 %v611, 0.5
      %v644 = vmul.f32 %v612, 0.5
      %v645 = vmul.f32 %v613, 0.5
      %v646 = vmul.f32 %v614, 0.5
      %v647 = vmul.f32 %v615, 0.5
      %v648 = vmul.f32 %v616, 0.5
      %v649 = vadd.f32 %v617, 0.5
      %v650 = vadd.f32 %v618, 0.5
      %v651 = vadd.f32 %v619, 0.5
      %v652 = vadd.f32 %v620, 0.5
      %v653 = vadd.f32 %v621, 0.5
      %v654 = vadd.f32 %v622, 0.5
      %v655 = vadd.f32 %v623, 0.5
      %v656 = vadd.f32 %v624, 0.5
      %v657 = vadd.f32 %v625, 0.5
      %v658 = vadd.f32 %v626, 0.5
      %v659 = vadd.f32 %v627, 0.5
      %v660 = vadd.f32 %v628, 0.5
      %v661 = vadd.f32 %v629, 0.5
      %v662 = vadd.f32 %v630, 0.5
      %v663 = vadd.f32 %v631, 0.5
      %v664 = vadd.f32 %v632, 0.5
      %v665 = vadd.f32 %v633, 0.5
      %v666 = vadd.f32 %v634, 0.5
      %v667 = vadd.f32 %v635, 0.5
      %v668 = vadd.f32 %v636, 0.5
      %v669 = vadd.f32 %v637, 0.5
      %v670 = vadd.f32 %v638, 0.5
      %v671 = vadd.f32 %v639, 0.5
      %v672 = vadd.f32 %v640, 0.5
      %v673 = vadd.f32 %v641, 0.5
      %v674 = vadd.f32 %v642, 0.5
      %v675 = vadd.f32 %v643, 0.5
      %v676 = vadd.f32 %v644, 0.5
      %v677 = vadd.f32 %v645, 0.5
      %v678 = vadd.f32 %v646, 0.5
      %v679 = vadd.f32 %v647, 0.5
      %v680 = vadd.f32 %v648, 0.5
      %v681 = vpack.c.bf16 %v650, %v649
      %v682 = vpack.c.bf16 %v652, %v651
      %v683 = vpack.c.bf16 %v654, %v653
      %v684 = vpack.c.bf16 %v656, %v655
      %v685 = vpack.c.bf16 %v658, %v657
      %v686 = vpack.c.bf16 %v660, %v659
      %v687 = vpack.c.bf16 %v662, %v661
      %v688 = vpack.c.bf16 %v664, %v663
      %v689 = vpack.c.bf16 %v666, %v665
      %v690 = vpack.c.bf16 %v668, %v667
      %v691 = vpack.c.bf16 %v670, %v669
      %v692 = vpack.c.bf16 %v672, %v671
      %v693 = vpack.c.bf16 %v674, %v673
      %v694 = vpack.c.bf16 %v676, %v675
      %v695 = vpack.c.bf16 %v678, %v677
      %v696 = vpack.c.bf16 %v680, %v679
      %v697 = vld [vmem:[%s3] sm:$0xf]
      %v698 = vld [vmem:[%s3 + $0x4] sm:$0xf]
      %v699 = vld [vmem:[%s3 + $0x8] sm:$0xf]
      %v700 = vld [vmem:[%s3 + $0xc] sm:$0xf]
      %v701 = vld [vmem:[%s4] sm:$0x1]
      %v703 = vlaneseq
      %v704 = vshrl.u32 %v703, 7
      %v705 = vsub.s32 0, %v704
      %v706 = vrot.slane %v701, %v705
      %v712 = vunpack.c.l.b16 %v697
      %v713 = vunpack.c.l.b16 %v698
      %v714 = vunpack.c.l.b16 %v699
      %v715 = vunpack.c.l.b16 %v700
      %v716 = vpack.c.b16 %v713, %v712
      %v717 = vpack.c.b16 %v715, %v714
      %vm720 = vcmask 261120
      %v722 = vsel %vm720, %v681, 0
      %v725 = vsel %vm720, %v682, 0
      %v728 = vsel %vm720, %v683, 0
      %v731 = vsel %vm720, %v684, 0
      %v734 = vsel %vm720, %v685, 0
      %v737 = vsel %vm720, %v686, 0
      %v740 = vsel %vm720, %v687, 0
      %v743 = vsel %vm720, %v688, 0
      %v746 = vsel %vm720, %v689, 0
      %v749 = vsel %vm720, %v690, 0
      %v752 = vsel %vm720, %v691, 0
      %v755 = vsel %vm720, %v692, 0
      %v758 = vsel %vm720, %v693, 0
      %v761 = vsel %vm720, %v694, 0
      %v764 = vsel %vm720, %v695, 0
      %v767 = vsel %vm720, %v696, 0
      %769 = vmatprep.subr.bf16.mxu0 0
      %770 = vmatpush1.bf16.msra.mxu0 0
      %771 = vmatprep.subr.bf16.mxu0 0
      %772 = vmatpush1.bf16.msra.mxu0 0
      %773 = vmatprep.subr.bf16.mxu0 0
      %774 = vmatpush1.bf16.msra.mxu0 0
      %775 = vmatprep.subr.bf16.mxu0 0
      %776 = vmatpush1.bf16.msra.mxu0 0
      %777 = vmatprep.subr.bf16.mxu0 0
      %778 = vmatpush1.bf16.msra.mxu0 0
      %779 = vmatprep.subr.bf16.mxu0 0
      %780 = vmatpush1.bf16.msra.mxu0 0
      %781 = vmatprep.subr.bf16.mxu0 0
      %782 = vmatpush1.bf16.msra.mxu0 %v717
      %783 = vmatprep.subr.bf16.mxu0 0
      %784 = vmatpush1.bf16.msra.mxu0 %v716
      %785 = vmatprep.subr.bf16.mxu0 0
      %786 = vmatpush2.bf16.msra.mxu0 0
      %787 = vmatprep.subr.bf16.mxu0 0
      %788 = vmatpush2.bf16.msra.mxu0 0
      %789 = vmatprep.subr.bf16.mxu0 0
      %790 = vmatpush2.bf16.msra.mxu0 0
      %791 = vmatprep.subr.bf16.mxu0 0
      %792 = vmatpush2.bf16.msra.mxu0 0
      %793 = vmatprep.subr.bf16.mxu0 0
      %794 = vmatpush2.bf16.msra.mxu0 0
      %795 = vmatprep.subr.bf16.mxu0 0
      %796 = vmatpush2.bf16.msra.mxu0 0
      %797 = vmatprep.subr.bf16.mxu0 0
      %798 = vmatpush2.bf16.msra.mxu0 0
      %799 = vmatprep.subr.bf16.mxu0 0
      %800 = vmatpush2.bf16.msra.mxu0 0
      %801 = vmatprep.mubr.bf16.mxu0 0
      %802 = vmatmul.mubr.bf16.gmra.mxu0 %v722
      %v803 = vpop.f32.mrf.mxu0
      %v804 = vadd.f32 %v706, %v803
      %v805 = vpop.f32.mrf.mxu0
      %v806 = vpop.f32.mrf.mxu0
      %v807 = vadd.f32 %v706, %v806
      %v808 = vpop.f32.mrf.mxu0
      %809 = vmatprep.mubr.bf16.mxu0 0
      %810 = vmatmul.mubr.bf16.gmra.mxu0 %v725
      %v811 = vpop.f32.mrf.mxu0
      %v812 = vadd.f32 %v706, %v811
      %v813 = vpop.f32.mrf.mxu0
      %v814 = vpop.f32.mrf.mxu0
      %v815 = vadd.f32 %v706, %v814
      %v816 = vpop.f32.mrf.mxu0
      %817 = vmatprep.mubr.bf16.mxu0 0
      %818 = vmatmul.mubr.bf16.gmra.mxu0 %v728
      %v819 = vpop.f32.mrf.mxu0
      %v820 = vadd.f32 %v706, %v819
      %v821 = vpop.f32.mrf.mxu0
      %v822 = vpop.f32.mrf.mxu0
      %v823 = vadd.f32 %v706, %v822
      %v824 = vpop.f32.mrf.mxu0
      %825 = vmatprep.mubr.bf16.mxu0 0
      %826 = vmatmul.mubr.bf16.gmra.mxu0 %v731
      %v827 = vpop.f32.mrf.mxu0
      %v828 = vadd.f32 %v706, %v827
      %v829 = vpop.f32.mrf.mxu0
      %v830 = vpop.f32.mrf.mxu0
      %v831 = vadd.f32 %v706, %v830
      %v832 = vpop.f32.mrf.mxu0
      %833 = vmatprep.mubr.bf16.mxu0 0
      %834 = vmatmul.mubr.bf16.gmra.mxu0 %v734
      %v835 = vpop.f32.mrf.mxu0
      %v836 = vadd.f32 %v706, %v835
      %v837 = vpop.f32.mrf.mxu0
      %v838 = vpop.f32.mrf.mxu0
      %v839 = vadd.f32 %v706, %v838
      %v840 = vpop.f32.mrf.mxu0
      %841 = vmatprep.mubr.bf16.mxu0 0
      %842 = vmatmul.mubr.bf16.gmra.mxu0 %v737
      %v843 = vpop.f32.mrf.mxu0
      %v844 = vadd.f32 %v706, %v843
      %v845 = vpop.f32.mrf.mxu0
      %v846 = vpop.f32.mrf.mxu0
      %v847 = vadd.f32 %v706, %v846
      %v848 = vpop.f32.mrf.mxu0
      %849 = vmatprep.mubr.bf16.mxu0 0
      %850 = vmatmul.mubr.bf16.gmra.mxu0 %v740
      %v851 = vpop.f32.mrf.mxu0
      %v852 = vadd.f32 %v706, %v851
      %v853 = vpop.f32.mrf.mxu0
      %v854 = vpop.f32.mrf.mxu0
      %v855 = vadd.f32 %v706, %v854
      %v856 = vpop.f32.mrf.mxu0
      %857 = vmatprep.mubr.bf16.mxu0 0
      %858 = vmatmul.mubr.bf16.gmra.mxu0 %v743
      %v859 = vpop.f32.mrf.mxu0
      %v860 = vadd.f32 %v706, %v859
      %v861 = vpop.f32.mrf.mxu0
      %v862 = vpop.f32.mrf.mxu0
      %v863 = vadd.f32 %v706, %v862
      %v864 = vpop.f32.mrf.mxu0
      %865 = vmatprep.mubr.bf16.mxu0 0
      %866 = vmatmul.mubr.bf16.gmra.mxu0 %v746
      %v867 = vpop.f32.mrf.mxu0
      %v868 = vadd.f32 %v706, %v867
      %v869 = vpop.f32.mrf.mxu0
      %v870 = vpop.f32.mrf.mxu0
      %v871 = vadd.f32 %v706, %v870
      %v872 = vpop.f32.mrf.mxu0
      %873 = vmatprep.mubr.bf16.mxu0 0
      %874 = vmatmul.mubr.bf16.gmra.mxu0 %v749
      %v875 = vpop.f32.mrf.mxu0
      %v876 = vadd.f32 %v706, %v875
      %v877 = vpop.f32.mrf.mxu0
      %v878 = vpop.f32.mrf.mxu0
      %v879 = vadd.f32 %v706, %v878
      %v880 = vpop.f32.mrf.mxu0
      %881 = vmatprep.mubr.bf16.mxu0 0
      %882 = vmatmul.mubr.bf16.gmra.mxu0 %v752
      %v883 = vpop.f32.mrf.mxu0
      %v884 = vadd.f32 %v706, %v883
      %v885 = vpop.f32.mrf.mxu0
      %v886 = vpop.f32.mrf.mxu0
      %v887 = vadd.f32 %v706, %v886
      %v888 = vpop.f32.mrf.mxu0
      %889 = vmatprep.mubr.bf16.mxu0 0
      %890 = vmatmul.mubr.bf16.gmra.mxu0 %v755
      %v891 = vpop.f32.mrf.mxu0
      %v892 = vadd.f32 %v706, %v891
      %v893 = vpop.f32.mrf.mxu0
      %v894 = vpop.f32.mrf.mxu0
      %v895 = vadd.f32 %v706, %v894
      %v896 = vpop.f32.mrf.mxu0
      %897 = vmatprep.mubr.bf16.mxu0 0
      %898 = vmatmul.mubr.bf16.gmra.mxu0 %v758
      %v899 = vpop.f32.mrf.mxu0
      %v900 = vadd.f32 %v706, %v899
      %v901 = vpop.f32.mrf.mxu0
      %v902 = vpop.f32.mrf.mxu0
      %v903 = vadd.f32 %v706, %v902
      %v904 = vpop.f32.mrf.mxu0
      %905 = vmatprep.mubr.bf16.mxu0 0
      %906 = vmatmul.mubr.bf16.gmra.mxu0 %v761
      %v907 = vpop.f32.mrf.mxu0
      %v908 = vadd.f32 %v706, %v907
      %v909 = vpop.f32.mrf.mxu0
      %v910 = vpop.f32.mrf.mxu0
      %v911 = vadd.f32 %v706, %v910
      %v912 = vpop.f32.mrf.mxu0
      %913 = vmatprep.mubr.bf16.mxu0 0
      %914 = vmatmul.mubr.bf16.gmra.mxu0 %v764
      %v915 = vpop.f32.mrf.mxu0
      %v916 = vadd.f32 %v706, %v915
      %v917 = vpop.f32.mrf.mxu0
      %v918 = vpop.f32.mrf.mxu0
      %v919 = vadd.f32 %v706, %v918
      %v920 = vpop.f32.mrf.mxu0
      %921 = vmatprep.mubr.bf16.mxu0 0
      %922 = vmatmul.mubr.bf16.gmra.mxu0 %v767
      %v923 = vpop.f32.mrf.mxu0
      %v924 = vadd.f32 %v706, %v923
      %v925 = vpop.f32.mrf.mxu0
      %v926 = vpop.f32.mrf.mxu0
      %v927 = vadd.f32 %v706, %v926
      %v928 = vpop.f32.mrf.mxu0
      %929 = vdwg.mxu0
      %v930 = vmul.f32 %v804, 0.5
      %v931 = vmul.f32 %v807, 0.5
      %v932 = vmul.f32 %v812, 0.5
      %v933 = vmul.f32 %v815, 0.5
      %v934 = vmul.f32 %v820, 0.5
      %v935 = vmul.f32 %v823, 0.5
      %v936 = vmul.f32 %v828, 0.5
      %v937 = vmul.f32 %v831, 0.5
      %v938 = vmul.f32 %v836, 0.5
      %v939 = vmul.f32 %v839, 0.5
      %v940 = vmul.f32 %v844, 0.5
      %v941 = vmul.f32 %v847, 0.5
      %v942 = vmul.f32 %v852, 0.5
      %v943 = vmul.f32 %v855, 0.5
      %v944 = vmul.f32 %v860, 0.5
      %v945 = vmul.f32 %v863, 0.5
      %v946 = vmul.f32 %v868, 0.5
      %v947 = vmul.f32 %v871, 0.5
      %v948 = vmul.f32 %v876, 0.5
      %v949 = vmul.f32 %v879, 0.5
      %v950 = vmul.f32 %v884, 0.5
      %v951 = vmul.f32 %v887, 0.5
      %v952 = vmul.f32 %v892, 0.5
      %v953 = vmul.f32 %v895, 0.5
      %v954 = vmul.f32 %v900, 0.5
      %v955 = vmul.f32 %v903, 0.5
      %v956 = vmul.f32 %v908, 0.5
      %v957 = vmul.f32 %v911, 0.5
      %v958 = vmul.f32 %v916, 0.5
      %v959 = vmul.f32 %v919, 0.5
      %v960 = vmul.f32 %v924, 0.5
      %v961 = vmul.f32 %v927, 0.5
      %v962 = vtanh.pop %v930
      %v963 = vtanh.pop %v931
      %v964 = vtanh.pop %v932
      %v965 = vtanh.pop %v933
      %v966 = vtanh.pop %v934
      %v967 = vtanh.pop %v935
      %v968 = vtanh.pop %v936
      %v969 = vtanh.pop %v937
      %v970 = vtanh.pop %v938
      %v971 = vtanh.pop %v939
      %v972 = vtanh.pop %v940
      %v973 = vtanh.pop %v941
      %v974 = vtanh.pop %v942
      %v975 = vtanh.pop %v943
      %v976 = vtanh.pop %v944
      %v977 = vtanh.pop %v945
      %v978 = vtanh.pop %v946
      %v979 = vtanh.pop %v947
      %v980 = vtanh.pop %v948
      %v981 = vtanh.pop %v949
      %v982 = vtanh.pop %v950
      %v983 = vtanh.pop %v951
      %v984 = vtanh.pop %v952
      %v985 = vtanh.pop %v953
      %v986 = vtanh.pop %v954
      %v987 = vtanh.pop %v955
      %v988 = vtanh.pop %v956
      %v989 = vtanh.pop %v957
      %v990 = vtanh.pop %v958
      %v991 = vtanh.pop %v959
      %v992 = vtanh.pop %v960
      %v993 = vtanh.pop %v961
      %v994 = vmul.f32 %v962, 0.5
      %v995 = vmul.f32 %v963, 0.5
      %v996 = vmul.f32 %v964, 0.5
      %v997 = vmul.f32 %v965, 0.5
      %v998 = vmul.f32 %v966, 0.5
      %v999 = vmul.f32 %v967, 0.5
      %v1000 = vmul.f32 %v968, 0.5
      %v1001 = vmul.f32 %v969, 0.5
      %v1002 = vmul.f32 %v970, 0.5
      %v1003 = vmul.f32 %v971, 0.5
      %v1004 = vmul.f32 %v972, 0.5
      %v1005 = vmul.f32 %v973, 0.5
      %v1006 = vmul.f32 %v974, 0.5
      %v1007 = vmul.f32 %v975, 0.5
      %v1008 = vmul.f32 %v976, 0.5
      %v1009 = vmul.f32 %v977, 0.5
      %v1010 = vmul.f32 %v978, 0.5
      %v1011 = vmul.f32 %v979, 0.5
      %v1012 = vmul.f32 %v980, 0.5
      %v1013 = vmul.f32 %v981, 0.5
      %v1014 = vmul.f32 %v982, 0.5
      %v1015 = vmul.f32 %v983, 0.5
      %v1016 = vmul.f32 %v984, 0.5
      %v1017 = vmul.f32 %v985, 0.5
      %v1018 = vmul.f32 %v986, 0.5
      %v1019 = vmul.f32 %v987, 0.5
      %v1020 = vmul.f32 %v988, 0.5
      %v1021 = vmul.f32 %v989, 0.5
      %v1022 = vmul.f32 %v990, 0.5
      %v1023 = vmul.f32 %v991, 0.5
      %v1024 = vmul.f32 %v992, 0.5
      %v1025 = vmul.f32 %v993, 0.5
      %v1026 = vadd.f32 %v994, 0.5
      %v1027 = vadd.f32 %v995, 0.5
      %v1028 = vadd.f32 %v996, 0.5
      %v1029 = vadd.f32 %v997, 0.5
      %v1030 = vadd.f32 %v998, 0.5
      %v1031 = vadd.f32 %v999, 0.5
      %v1032 = vadd.f32 %v1000, 0.5
      %v1033 = vadd.f32 %v1001, 0.5
      %v1034 = vadd.f32 %v1002, 0.5
      %v1035 = vadd.f32 %v1003, 0.5
      %v1036 = vadd.f32 %v1004, 0.5
      %v1037 = vadd.f32 %v1005, 0.5
      %v1038 = vadd.f32 %v1006, 0.5
      %v1039 = vadd.f32 %v1007, 0.5
      %v1040 = vadd.f32 %v1008, 0.5
      %v1041 = vadd.f32 %v1009, 0.5
      %v1042 = vadd.f32 %v1010, 0.5
      %v1043 = vadd.f32 %v1011, 0.5
      %v1044 = vadd.f32 %v1012, 0.5
      %v1045 = vadd.f32 %v1013, 0.5
      %v1046 = vadd.f32 %v1014, 0.5
      %v1047 = vadd.f32 %v1015, 0.5
      %v1048 = vadd.f32 %v1016, 0.5
      %v1049 = vadd.f32 %v1017, 0.5
      %v1050 = vadd.f32 %v1018, 0.5
      %v1051 = vadd.f32 %v1019, 0.5
      %v1052 = vadd.f32 %v1020, 0.5
      %v1053 = vadd.f32 %v1021, 0.5
      %v1054 = vadd.f32 %v1022, 0.5
      %v1055 = vadd.f32 %v1023, 0.5
      %v1056 = vadd.f32 %v1024, 0.5
      %v1057 = vadd.f32 %v1025, 0.5
      %v1058 = vpack.c.bf16 %v1027, %v1026
      %v1059 = vpack.c.bf16 %v1029, %v1028
      %v1060 = vpack.c.bf16 %v1031, %v1030
      %v1061 = vpack.c.bf16 %v1033, %v1032
      %v1062 = vpack.c.bf16 %v1035, %v1034
      %v1063 = vpack.c.bf16 %v1037, %v1036
      %v1064 = vpack.c.bf16 %v1039, %v1038
      %v1065 = vpack.c.bf16 %v1041, %v1040
      %v1066 = vpack.c.bf16 %v1043, %v1042
      %v1067 = vpack.c.bf16 %v1045, %v1044
      %v1068 = vpack.c.bf16 %v1047, %v1046
      %v1069 = vpack.c.bf16 %v1049, %v1048
      %v1070 = vpack.c.bf16 %v1051, %v1050
      %v1071 = vpack.c.bf16 %v1053, %v1052
      %v1072 = vpack.c.bf16 %v1055, %v1054
      %v1073 = vpack.c.bf16 %v1057, %v1056
      %v1074 = vld [vmem:[%s5] sm:$0xf]
      %v1075 = vld [vmem:[%s5 + $0x4] sm:$0xf]
      %v1076 = vld [vmem:[%s5 + $0x8] sm:$0xf]
      %v1077 = vld [vmem:[%s5 + $0xc] sm:$0xf]
      %v1078 = vld [vmem:[%s6] sm:$0x1]
      %v1080 = vlaneseq
      %v1081 = vshrl.u32 %v1080, 7
      %v1082 = vsub.s32 0, %v1081
      %v1083 = vrot.slane %v1078, %v1082
      %v1089 = vunpack.c.l.b16 %v1074
      %v1090 = vunpack.c.l.b16 %v1075
      %v1091 = vunpack.c.l.b16 %v1076
      %v1092 = vunpack.c.l.b16 %v1077
      %v1093 = vpack.c.b16 %v1090, %v1089
      %v1094 = vpack.c.b16 %v1092, %v1091
      %v1098 = vsel %vm720, %v1058, 0
      %v1101 = vsel %vm720, %v1059, 0
      %v1104 = vsel %vm720, %v1060, 0
      %v1107 = vsel %vm720, %v1061, 0
      %v1110 = vsel %vm720, %v1062, 0
      %v1113 = vsel %vm720, %v1063, 0
      %v1116 = vsel %vm720, %v1064, 0
      %v1119 = vsel %vm720, %v1065, 0
      %v1122 = vsel %vm720, %v1066, 0
      %v1125 = vsel %vm720, %v1067, 0
      %v1128 = vsel %vm720, %v1068, 0
      %v1131 = vsel %vm720, %v1069, 0
      %v1134 = vsel %vm720, %v1070, 0
      %v1137 = vsel %vm720, %v1071, 0
      %v1140 = vsel %vm720, %v1072, 0
      %v1143 = vsel %vm720, %v1073, 0
      %1145 = vmatprep.subr.bf16.mxu0 0
      %1146 = vmatpush1.bf16.msra.mxu0 0
      %1147 = vmatprep.subr.bf16.mxu0 0
      %1148 = vmatpush1.bf16.msra.mxu0 0
      %1149 = vmatprep.subr.bf16.mxu0 0
      %1150 = vmatpush1.bf16.msra.mxu0 0
      %1151 = vmatprep.subr.bf16.mxu0 0
      %1152 = vmatpush1.bf16.msra.mxu0 0
      %1153 = vmatprep.subr.bf16.mxu0 0
      %1154 = vmatpush1.bf16.msra.mxu0 0
      %1155 = vmatprep.subr.bf16.mxu0 0
      %1156 = vmatpush1.bf16.msra.mxu0 0
      %1157 = vmatprep.subr.bf16.mxu0 0
      %1158 = vmatpush1.bf16.msra.mxu0 %v1094
      %1159 = vmatprep.subr.bf16.mxu0 0
      %1160 = vmatpush1.bf16.msra.mxu0 %v1093
      %1161 = vmatprep.subr.bf16.mxu0 0
      %1162 = vmatpush2.bf16.msra.mxu0 0
      %1163 = vmatprep.subr.bf16.mxu0 0
      %1164 = vmatpush2.bf16.msra.mxu0 0
      %1165 = vmatprep.subr.bf16.mxu0 0
      %1166 = vmatpush2.bf16.msra.mxu0 0
      %1167 = vmatprep.subr.bf16.mxu0 0
      %1168 = vmatpush2.bf16.msra.mxu0 0
      %1169 = vmatprep.subr.bf16.mxu0 0
      %1170 = vmatpush2.bf16.msra.mxu0 0
      %1171 = vmatprep.subr.bf16.mxu0 0
      %1172 = vmatpush2.bf16.msra.mxu0 0
      %1173 = vmatprep.subr.bf16.mxu0 0
      %1174 = vmatpush2.bf16.msra.mxu0 0
      %1175 = vmatprep.subr.bf16.mxu0 0
      %1176 = vmatpush2.bf16.msra.mxu0 0
      %1177 = vmatprep.mubr.bf16.mxu0 0
      %1178 = vmatmul.mubr.bf16.gmra.mxu0 %v1098
      %v1179 = vpop.f32.mrf.mxu0
      %v1180 = vadd.f32 %v1083, %v1179
      %v1181 = vpop.f32.mrf.mxu0
      %v1182 = vpop.f32.mrf.mxu0
      %v1183 = vadd.f32 %v1083, %v1182
      %v1184 = vpop.f32.mrf.mxu0
      %1185 = vmatprep.mubr.bf16.mxu0 0
      %1186 = vmatmul.mubr.bf16.gmra.mxu0 %v1101
      %v1187 = vpop.f32.mrf.mxu0
      %v1188 = vadd.f32 %v1083, %v1187
      %v1189 = vpop.f32.mrf.mxu0
      %v1190 = vpop.f32.mrf.mxu0
      %v1191 = vadd.f32 %v1083, %v1190
      %v1192 = vpop.f32.mrf.mxu0
      %1193 = vmatprep.mubr.bf16.mxu0 0
      %1194 = vmatmul.mubr.bf16.gmra.mxu0 %v1104
      %v1195 = vpop.f32.mrf.mxu0
      %v1196 = vadd.f32 %v1083, %v1195
      %v1197 = vpop.f32.mrf.mxu0
      %v1198 = vpop.f32.mrf.mxu0
      %v1199 = vadd.f32 %v1083, %v1198
      %v1200 = vpop.f32.mrf.mxu0
      %1201 = vmatprep.mubr.bf16.mxu0 0
      %1202 = vmatmul.mubr.bf16.gmra.mxu0 %v1107
      %v1203 = vpop.f32.mrf.mxu0
      %v1204 = vadd.f32 %v1083, %v1203
      %v1205 = vpop.f32.mrf.mxu0
      %v1206 = vpop.f32.mrf.mxu0
      %v1207 = vadd.f32 %v1083, %v1206
      %v1208 = vpop.f32.mrf.mxu0
      %1209 = vmatprep.mubr.bf16.mxu0 0
      %1210 = vmatmul.mubr.bf16.gmra.mxu0 %v1110
      %v1211 = vpop.f32.mrf.mxu0
      %v1212 = vadd.f32 %v1083, %v1211
      %v1213 = vpop.f32.mrf.mxu0
      %v1214 = vpop.f32.mrf.mxu0
      %v1215 = vadd.f32 %v1083, %v1214
      %v1216 = vpop.f32.mrf.mxu0
      %1217 = vmatprep.mubr.bf16.mxu0 0
      %1218 = vmatmul.mubr.bf16.gmra.mxu0 %v1113
      %v1219 = vpop.f32.mrf.mxu0
      %v1220 = vadd.f32 %v1083, %v1219
      %v1221 = vpop.f32.mrf.mxu0
      %v1222 = vpop.f32.mrf.mxu0
      %v1223 = vadd.f32 %v1083, %v1222
      %v1224 = vpop.f32.mrf.mxu0
      %1225 = vmatprep.mubr.bf16.mxu0 0
      %1226 = vmatmul.mubr.bf16.gmra.mxu0 %v1116
      %v1227 = vpop.f32.mrf.mxu0
      %v1228 = vadd.f32 %v1083, %v1227
      %v1229 = vpop.f32.mrf.mxu0
      %v1230 = vpop.f32.mrf.mxu0
      %v1231 = vadd.f32 %v1083, %v1230
      %v1232 = vpop.f32.mrf.mxu0
      %1233 = vmatprep.mubr.bf16.mxu0 0
      %1234 = vmatmul.mubr.bf16.gmra.mxu0 %v1119
      %v1235 = vpop.f32.mrf.mxu0
      %v1236 = vadd.f32 %v1083, %v1235
      %v1237 = vpop.f32.mrf.mxu0
      %v1238 = vpop.f32.mrf.mxu0
      %v1239 = vadd.f32 %v1083, %v1238
      %v1240 = vpop.f32.mrf.mxu0
      %1241 = vmatprep.mubr.bf16.mxu0 0
      %1242 = vmatmul.mubr.bf16.gmra.mxu0 %v1122
      %v1243 = vpop.f32.mrf.mxu0
      %v1244 = vadd.f32 %v1083, %v1243
      %v1245 = vpop.f32.mrf.mxu0
      %v1246 = vpop.f32.mrf.mxu0
      %v1247 = vadd.f32 %v1083, %v1246
      %v1248 = vpop.f32.mrf.mxu0
      %1249 = vmatprep.mubr.bf16.mxu0 0
      %1250 = vmatmul.mubr.bf16.gmra.mxu0 %v1125
      %v1251 = vpop.f32.mrf.mxu0
      %v1252 = vadd.f32 %v1083, %v1251
      %v1253 = vpop.f32.mrf.mxu0
      %v1254 = vpop.f32.mrf.mxu0
      %v1255 = vadd.f32 %v1083, %v1254
      %v1256 = vpop.f32.mrf.mxu0
      %1257 = vmatprep.mubr.bf16.mxu0 0
      %1258 = vmatmul.mubr.bf16.gmra.mxu0 %v1128
      %v1259 = vpop.f32.mrf.mxu0
      %v1260 = vadd.f32 %v1083, %v1259
      %v1261 = vpop.f32.mrf.mxu0
      %v1262 = vpop.f32.mrf.mxu0
      %v1263 = vadd.f32 %v1083, %v1262
      %v1264 = vpop.f32.mrf.mxu0
      %1265 = vmatprep.mubr.bf16.mxu0 0
      %1266 = vmatmul.mubr.bf16.gmra.mxu0 %v1131
      %v1267 = vpop.f32.mrf.mxu0
      %v1268 = vadd.f32 %v1083, %v1267
      %v1269 = vpop.f32.mrf.mxu0
      %v1270 = vpop.f32.mrf.mxu0
      %v1271 = vadd.f32 %v1083, %v1270
      %v1272 = vpop.f32.mrf.mxu0
      %1273 = vmatprep.mubr.bf16.mxu0 0
      %1274 = vmatmul.mubr.bf16.gmra.mxu0 %v1134
      %v1275 = vpop.f32.mrf.mxu0
      %v1276 = vadd.f32 %v1083, %v1275
      %v1277 = vpop.f32.mrf.mxu0
      %v1278 = vpop.f32.mrf.mxu0
      %v1279 = vadd.f32 %v1083, %v1278
      %v1280 = vpop.f32.mrf.mxu0
      %1281 = vmatprep.mubr.bf16.mxu0 0
      %1282 = vmatmul.mubr.bf16.gmra.mxu0 %v1137
      %v1283 = vpop.f32.mrf.mxu0
      %v1284 = vadd.f32 %v1083, %v1283
      %v1285 = vpop.f32.mrf.mxu0
      %v1286 = vpop.f32.mrf.mxu0
      %v1287 = vadd.f32 %v1083, %v1286
      %v1288 = vpop.f32.mrf.mxu0
      %1289 = vmatprep.mubr.bf16.mxu0 0
      %1290 = vmatmul.mubr.bf16.gmra.mxu0 %v1140
      %v1291 = vpop.f32.mrf.mxu0
      %v1292 = vadd.f32 %v1083, %v1291
      %v1293 = vpop.f32.mrf.mxu0
      %v1294 = vpop.f32.mrf.mxu0
      %v1295 = vadd.f32 %v1083, %v1294
      %v1296 = vpop.f32.mrf.mxu0
      %1297 = vmatprep.mubr.bf16.mxu0 0
      %1298 = vmatmul.mubr.bf16.gmra.mxu0 %v1143
      %v1299 = vpop.f32.mrf.mxu0
      %v1300 = vadd.f32 %v1083, %v1299
      %v1301 = vpop.f32.mrf.mxu0
      %v1302 = vpop.f32.mrf.mxu0
      %v1303 = vadd.f32 %v1083, %v1302
      %v1304 = vpop.f32.mrf.mxu0
      %1305 = vdwg.mxu0
      %1306 = vmax.xlane.f32.xlu0 %v1180
      %v1307 = vpop.xlane.xlu0 %1306
      %1308 = vmax.xlane.f32.xlu0 %v1183
      %v1309 = vpop.xlane.xlu0 %1308
      %1310 = vmax.xlane.f32.xlu0 %v1188
      %v1311 = vpop.xlane.xlu0 %1310
      %1312 = vmax.xlane.f32.xlu0 %v1191
      %v1313 = vpop.xlane.xlu0 %1312
      %1314 = vmax.xlane.f32.xlu0 %v1196
      %v1315 = vpop.xlane.xlu0 %1314
      %1316 = vmax.xlane.f32.xlu0 %v1199
      %v1317 = vpop.xlane.xlu0 %1316
      %1318 = vmax.xlane.f32.xlu0 %v1204
      %v1319 = vpop.xlane.xlu0 %1318
      %1320 = vmax.xlane.f32.xlu0 %v1207
      %v1321 = vpop.xlane.xlu0 %1320
      %1322 = vmax.xlane.f32.xlu0 %v1212
      %v1323 = vpop.xlane.xlu0 %1322
      %1324 = vmax.xlane.f32.xlu0 %v1215
      %v1325 = vpop.xlane.xlu0 %1324
      %1326 = vmax.xlane.f32.xlu0 %v1220
      %v1327 = vpop.xlane.xlu0 %1326
      %1328 = vmax.xlane.f32.xlu0 %v1223
      %v1329 = vpop.xlane.xlu0 %1328
      %1330 = vmax.xlane.f32.xlu0 %v1228
      %v1331 = vpop.xlane.xlu0 %1330
      %1332 = vmax.xlane.f32.xlu0 %v1231
      %v1333 = vpop.xlane.xlu0 %1332
      %1334 = vmax.xlane.f32.xlu0 %v1236
      %v1335 = vpop.xlane.xlu0 %1334
      %1336 = vmax.xlane.f32.xlu0 %v1239
      %v1337 = vpop.xlane.xlu0 %1336
      %1338 = vmax.xlane.f32.xlu0 %v1244
      %v1339 = vpop.xlane.xlu0 %1338
      %1340 = vmax.xlane.f32.xlu0 %v1247
      %v1341 = vpop.xlane.xlu0 %1340
      %1342 = vmax.xlane.f32.xlu0 %v1252
      %v1343 = vpop.xlane.xlu0 %1342
      %1344 = vmax.xlane.f32.xlu0 %v1255
      %v1345 = vpop.xlane.xlu0 %1344
      %1346 = vmax.xlane.f32.xlu0 %v1260
      %v1347 = vpop.xlane.xlu0 %1346
      %1348 = vmax.xlane.f32.xlu0 %v1263
      %v1349 = vpop.xlane.xlu0 %1348
      %1350 = vmax.xlane.f32.xlu0 %v1268
      %v1351 = vpop.xlane.xlu0 %1350
      %1352 = vmax.xlane.f32.xlu0 %v1271
      %v1353 = vpop.xlane.xlu0 %1352
      %1354 = vmax.xlane.f32.xlu0 %v1276
      %v1355 = vpop.xlane.xlu0 %1354
      %1356 = vmax.xlane.f32.xlu0 %v1279
      %v1357 = vpop.xlane.xlu0 %1356
      %1358 = vmax.xlane.f32.xlu0 %v1284
      %v1359 = vpop.xlane.xlu0 %1358
      %1360 = vmax.xlane.f32.xlu0 %v1287
      %v1361 = vpop.xlane.xlu0 %1360
      %1362 = vmax.xlane.f32.xlu0 %v1292
      %v1363 = vpop.xlane.xlu0 %1362
      %1364 = vmax.xlane.f32.xlu0 %v1295
      %v1365 = vpop.xlane.xlu0 %1364
      %1366 = vmax.xlane.f32.xlu0 %v1300
      %v1367 = vpop.xlane.xlu0 %1366
      %1368 = vmax.xlane.f32.xlu0 %v1303
      %v1369 = vpop.xlane.xlu0 %1368
      %v1370 = vsub.f32 %v1180, %v1307
      %v1371 = vsub.f32 %v1183, %v1309
      %v1372 = vsub.f32 %v1188, %v1311
      %v1373 = vsub.f32 %v1191, %v1313
      %v1374 = vsub.f32 %v1196, %v1315
      %v1375 = vsub.f32 %v1199, %v1317
      %v1376 = vsub.f32 %v1204, %v1319
      %v1377 = vsub.f32 %v1207, %v1321
      %v1378 = vsub.f32 %v1212, %v1323
      %v1379 = vsub.f32 %v1215, %v1325
      %v1380 = vsub.f32 %v1220, %v1327
      %v1381 = vsub.f32 %v1223, %v1329
      %v1382 = vsub.f32 %v1228, %v1331
      %v1383 = vsub.f32 %v1231, %v1333
      %v1384 = vsub.f32 %v1236, %v1335
      %v1385 = vsub.f32 %v1239, %v1337
      %v1386 = vsub.f32 %v1244, %v1339
      %v1387 = vsub.f32 %v1247, %v1341
      %v1388 = vsub.f32 %v1252, %v1343
      %v1389 = vsub.f32 %v1255, %v1345
      %v1390 = vsub.f32 %v1260, %v1347
      %v1391 = vsub.f32 %v1263, %v1349
      %v1392 = vsub.f32 %v1268, %v1351
      %v1393 = vsub.f32 %v1271, %v1353
      %v1394 = vsub.f32 %v1276, %v1355
      %v1395 = vsub.f32 %v1279, %v1357
      %v1396 = vsub.f32 %v1284, %v1359
      %v1397 = vsub.f32 %v1287, %v1361
      %v1398 = vsub.f32 %v1292, %v1363
      %v1399 = vsub.f32 %v1295, %v1365
      %v1400 = vsub.f32 %v1300, %v1367
      %v1401 = vsub.f32 %v1303, %v1369
      %v1402 = vmul.f32 %v1370, 1.442695
      %v1403 = vpow.pop %v1402
      %v1404 = vmul.f32 %v1371, 1.442695
      %v1405 = vpow.pop %v1404
      %v1406 = vmul.f32 %v1372, 1.442695
      %v1407 = vpow.pop %v1406
      %v1408 = vmul.f32 %v1373, 1.442695
      %v1409 = vpow.pop %v1408
      %v1410 = vmul.f32 %v1374, 1.442695
      %v1411 = vpow.pop %v1410
      %v1412 = vmul.f32 %v1375, 1.442695
      %v1413 = vpow.pop %v1412
      %v1414 = vmul.f32 %v1376, 1.442695
      %v1415 = vpow.pop %v1414
      %v1416 = vmul.f32 %v1377, 1.442695
      %v1417 = vpow.pop %v1416
      %v1418 = vmul.f32 %v1378, 1.442695
      %v1419 = vpow.pop %v1418
      %v1420 = vmul.f32 %v1379, 1.442695
      %v1421 = vpow.pop %v1420
      %v1422 = vmul.f32 %v1380, 1.442695
      %v1423 = vpow.pop %v1422
      %v1424 = vmul.f32 %v1381, 1.442695
      %v1425 = vpow.pop %v1424
      %v1426 = vmul.f32 %v1382, 1.442695
      %v1427 = vpow.pop %v1426
      %v1428 = vmul.f32 %v1383, 1.442695
      %v1429 = vpow.pop %v1428
      %v1430 = vmul.f32 %v1384, 1.442695
      %v1431 = vpow.pop %v1430
      %v1432 = vmul.f32 %v1385, 1.442695
      %v1433 = vpow.pop %v1432
      %v1434 = vmul.f32 %v1386, 1.442695
      %v1435 = vpow.pop %v1434
      %v1436 = vmul.f32 %v1387, 1.442695
      %v1437 = vpow.pop %v1436
      %v1438 = vmul.f32 %v1388, 1.442695
      %v1439 = vpow.pop %v1438
      %v1440 = vmul.f32 %v1389, 1.442695
      %v1441 = vpow.pop %v1440
      %v1442 = vmul.f32 %v1390, 1.442695
      %v1443 = vpow.pop %v1442
      %v1444 = vmul.f32 %v1391, 1.442695
      %v1445 = vpow.pop %v1444
      %v1446 = vmul.f32 %v1392, 1.442695
      %v1447 = vpow.pop %v1446
      %v1448 = vmul.f32 %v1393, 1.442695
      %v1449 = vpow.pop %v1448
      %v1450 = vmul.f32 %v1394, 1.442695
      %v1451 = vpow.pop %v1450
      %v1452 = vmul.f32 %v1395, 1.442695
      %v1453 = vpow.pop %v1452
      %v1454 = vmul.f32 %v1396, 1.442695
      %v1455 = vpow.pop %v1454
      %v1456 = vmul.f32 %v1397, 1.442695
      %v1457 = vpow.pop %v1456
      %v1458 = vmul.f32 %v1398, 1.442695
      %v1459 = vpow.pop %v1458
      %v1460 = vmul.f32 %v1399, 1.442695
      %v1461 = vpow.pop %v1460
      %v1462 = vmul.f32 %v1400, 1.442695
      %v1463 = vpow.pop %v1462
      %v1464 = vmul.f32 %v1401, 1.442695
      %v1465 = vpow.pop %v1464
      %1466 = vadd.xlane.f32.xlu0 %v1403
      %v1467 = vpop.xlane.xlu0 %1466
      %1468 = vadd.xlane.f32.xlu0 %v1405
      %v1469 = vpop.xlane.xlu0 %1468
      %1470 = vadd.xlane.f32.xlu0 %v1407
      %v1471 = vpop.xlane.xlu0 %1470
      %1472 = vadd.xlane.f32.xlu0 %v1409
      %v1473 = vpop.xlane.xlu0 %1472
      %1474 = vadd.xlane.f32.xlu0 %v1411
      %v1475 = vpop.xlane.xlu0 %1474
      %1476 = vadd.xlane.f32.xlu0 %v1413
      %v1477 = vpop.xlane.xlu0 %1476
      %1478 = vadd.xlane.f32.xlu0 %v1415
      %v1479 = vpop.xlane.xlu0 %1478
      %1480 = vadd.xlane.f32.xlu0 %v1417
      %v1481 = vpop.xlane.xlu0 %1480
      %1482 = vadd.xlane.f32.xlu0 %v1419
      %v1483 = vpop.xlane.xlu0 %1482
      %1484 = vadd.xlane.f32.xlu0 %v1421
      %v1485 = vpop.xlane.xlu0 %1484
      %1486 = vadd.xlane.f32.xlu0 %v1423
      %v1487 = vpop.xlane.xlu0 %1486
      %1488 = vadd.xlane.f32.xlu0 %v1425
      %v1489 = vpop.xlane.xlu0 %1488
      %1490 = vadd.xlane.f32.xlu0 %v1427
      %v1491 = vpop.xlane.xlu0 %1490
      %1492 = vadd.xlane.f32.xlu0 %v1429
      %v1493 = vpop.xlane.xlu0 %1492
      %1494 = vadd.xlane.f32.xlu0 %v1431
      %v1495 = vpop.xlane.xlu0 %1494
      %1496 = vadd.xlane.f32.xlu0 %v1433
      %v1497 = vpop.xlane.xlu0 %1496
      %1498 = vadd.xlane.f32.xlu0 %v1435
      %v1499 = vpop.xlane.xlu0 %1498
      %1500 = vadd.xlane.f32.xlu0 %v1437
      %v1501 = vpop.xlane.xlu0 %1500
      %1502 = vadd.xlane.f32.xlu0 %v1439
      %v1503 = vpop.xlane.xlu0 %1502
      %1504 = vadd.xlane.f32.xlu0 %v1441
      %v1505 = vpop.xlane.xlu0 %1504
      %1506 = vadd.xlane.f32.xlu0 %v1443
      %v1507 = vpop.xlane.xlu0 %1506
      %1508 = vadd.xlane.f32.xlu0 %v1445
      %v1509 = vpop.xlane.xlu0 %1508
      %1510 = vadd.xlane.f32.xlu0 %v1447
      %v1511 = vpop.xlane.xlu0 %1510
      %1512 = vadd.xlane.f32.xlu0 %v1449
      %v1513 = vpop.xlane.xlu0 %1512
      %1514 = vadd.xlane.f32.xlu0 %v1451
      %v1515 = vpop.xlane.xlu0 %1514
      %1516 = vadd.xlane.f32.xlu0 %v1453
      %v1517 = vpop.xlane.xlu0 %1516
      %1518 = vadd.xlane.f32.xlu0 %v1455
      %v1519 = vpop.xlane.xlu0 %1518
      %1520 = vadd.xlane.f32.xlu0 %v1457
      %v1521 = vpop.xlane.xlu0 %1520
      %1522 = vadd.xlane.f32.xlu0 %v1459
      %v1523 = vpop.xlane.xlu0 %1522
      %1524 = vadd.xlane.f32.xlu0 %v1461
      %v1525 = vpop.xlane.xlu0 %1524
      %1526 = vadd.xlane.f32.xlu0 %v1463
      %v1527 = vpop.xlane.xlu0 %1526
      %1528 = vadd.xlane.f32.xlu0 %v1465
      %v1529 = vpop.xlane.xlu0 %1528
      %v1530 = vrcp.pop %v1467
      %v1531 = vmul.f32 %v1403, %v1530
      %v1532 = vrcp.pop %v1469
      %v1533 = vmul.f32 %v1405, %v1532
      %v1534 = vrcp.pop %v1471
      %v1535 = vmul.f32 %v1407, %v1534
      %v1536 = vrcp.pop %v1473
      %v1537 = vmul.f32 %v1409, %v1536
      %v1538 = vrcp.pop %v1475
      %v1539 = vmul.f32 %v1411, %v1538
      %v1540 = vrcp.pop %v1477
      %v1541 = vmul.f32 %v1413, %v1540
      %v1542 = vrcp.pop %v1479
      %v1543 = vmul.f32 %v1415, %v1542
      %v1544 = vrcp.pop %v1481
      %v1545 = vmul.f32 %v1417, %v1544
      %v1546 = vrcp.pop %v1483
      %v1547 = vmul.f32 %v1419, %v1546
      %v1548 = vrcp.pop %v1485
      %v1549 = vmul.f32 %v1421, %v1548
      %v1550 = vrcp.pop %v1487
      %v1551 = vmul.f32 %v1423, %v1550
      %v1552 = vrcp.pop %v1489
      %v1553 = vmul.f32 %v1425, %v1552
      %v1554 = vrcp.pop %v1491
      %v1555 = vmul.f32 %v1427, %v1554
      %v1556 = vrcp.pop %v1493
      %v1557 = vmul.f32 %v1429, %v1556
      %v1558 = vrcp.pop %v1495
      %v1559 = vmul.f32 %v1431, %v1558
      %v1560 = vrcp.pop %v1497
      %v1561 = vmul.f32 %v1433, %v1560
      %v1562 = vrcp.pop %v1499
      %v1563 = vmul.f32 %v1435, %v1562
      %v1564 = vrcp.pop %v1501
      %v1565 = vmul.f32 %v1437, %v1564
      %v1566 = vrcp.pop %v1503
      %v1567 = vmul.f32 %v1439, %v1566
      %v1568 = vrcp.pop %v1505
      %v1569 = vmul.f32 %v1441, %v1568
      %v1570 = vrcp.pop %v1507
      %v1571 = vmul.f32 %v1443, %v1570
      %v1572 = vrcp.pop %v1509
      %v1573 = vmul.f32 %v1445, %v1572
      %v1574 = vrcp.pop %v1511
      %v1575 = vmul.f32 %v1447, %v1574
      %v1576 = vrcp.pop %v1513
      %v1577 = vmul.f32 %v1449, %v1576
      %v1578 = vrcp.pop %v1515
      %v1579 = vmul.f32 %v1451, %v1578
      %v1580 = vrcp.pop %v1517
      %v1581 = vmul.f32 %v1453, %v1580
      %v1582 = vrcp.pop %v1519
      %v1583 = vmul.f32 %v1455, %v1582
      %v1584 = vrcp.pop %v1521
      %v1585 = vmul.f32 %v1457, %v1584
      %v1586 = vrcp.pop %v1523
      %v1587 = vmul.f32 %v1459, %v1586
      %v1588 = vrcp.pop %v1525
      %v1589 = vmul.f32 %v1461, %v1588
      %v1590 = vrcp.pop %v1527
      %v1591 = vmul.f32 %v1463, %v1590
      %v1592 = vrcp.pop %v1529
      %v1593 = vmul.f32 %v1465, %v1592
      %1594 = vst.msk [vmem:[%s280] sm:$0xff] %vm339, %v1531
      %1595 = vst.msk [vmem:[%s280 + $0x8] sm:$0xff] %vm339, %v1533
      %1596 = vst.msk [vmem:[%s280 + $0x10] sm:$0xff] %vm339, %v1535
      %1597 = vst.msk [vmem:[%s280 + $0x18] sm:$0xff] %vm339, %v1537
      %1598 = vst.msk [vmem:[%s280 + $0x20] sm:$0xff] %vm339, %v1539
      %1599 = vst.msk [vmem:[%s280 + $0x28] sm:$0xff] %vm339, %v1541
      %1600 = vst.msk [vmem:[%s280 + $0x30] sm:$0xff] %vm339, %v1543
      %1601 = vst.msk [vmem:[%s280 + $0x38] sm:$0xff] %vm339, %v1545
      %1602 = vst.msk [vmem:[%s280 + $0x40] sm:$0xff] %vm339, %v1547
      %1603 = vst.msk [vmem:[%s280 + $0x48] sm:$0xff] %vm339, %v1549
      %1604 = vst.msk [vmem:[%s280 + $0x50] sm:$0xff] %vm339, %v1551
      %1605 = vst.msk [vmem:[%s280 + $0x58] sm:$0xff] %vm339, %v1553
      %1606 = vst.msk [vmem:[%s280 + $0x60] sm:$0xff] %vm339, %v1555
      %1607 = vst.msk [vmem:[%s280 + $0x68] sm:$0xff] %vm339, %v1557
      %1608 = vst.msk [vmem:[%s280 + $0x70] sm:$0xff] %vm339, %v1559
      %1609 = vst.msk [vmem:[%s280 + $0x78] sm:$0xff] %vm339, %v1561
      %1610 = vst.msk [vmem:[%s280 + $0x80] sm:$0xff] %vm339, %v1563
      %1611 = vst.msk [vmem:[%s280 + $0x88] sm:$0xff] %vm339, %v1565
      %1612 = vst.msk [vmem:[%s280 + $0x90] sm:$0xff] %vm339, %v1567
      %1613 = vst.msk [vmem:[%s280 + $0x98] sm:$0xff] %vm339, %v1569
      %1614 = vst.msk [vmem:[%s280 + $0xa0] sm:$0xff] %vm339, %v1571
      %1615 = vst.msk [vmem:[%s280 + $0xa8] sm:$0xff] %vm339, %v1573
      %1616 = vst.msk [vmem:[%s280 + $0xb0] sm:$0xff] %vm339, %v1575
      %1617 = vst.msk [vmem:[%s280 + $0xb8] sm:$0xff] %vm339, %v1577
      %1618 = vst.msk [vmem:[%s280 + $0xc0] sm:$0xff] %vm339, %v1579
      %1619 = vst.msk [vmem:[%s280 + $0xc8] sm:$0xff] %vm339, %v1581
      %1620 = vst.msk [vmem:[%s280 + $0xd0] sm:$0xff] %vm339, %v1583
      %1621 = vst.msk [vmem:[%s280 + $0xd8] sm:$0xff] %vm339, %v1585
      %1622 = vst.msk [vmem:[%s280 + $0xe0] sm:$0xff] %vm339, %v1587
      %1623 = vst.msk [vmem:[%s280 + $0xe8] sm:$0xff] %vm339, %v1589
      %1624 = vst.msk [vmem:[%s280 + $0xf0] sm:$0xff] %vm339, %v1591
      %1625 = vst.msk [vmem:[%s280 + $0xf8] sm:$0xff] %vm339, %v1593
      %s1626 = smul.u32 32, %s18
      %p1627 = scmp.lt.s32.totalorder %s1626, 63
      %s1628 = scalar_select %p1627, %s1626, 63
      %s1629 = smul.addr %s1628, 8
      %s1630 = scalar_lea.vmem %s7, %s1629
      // Predicated region
      $region49: #{tpu_custom_call.1} parent=47 // pred_check
        %p1631 = pneg %p188
      $region50: #{tpu_custom_call.1} parent=47 // pred_check_branch
        %1633 = sbr.rel (%p1631) target = $region52
      $region51: #{tpu_custom_call.1} parent=47 // pred_region
        %s1634 = smul.u32 32, %s18
      $region52: #{tpu_custom_call.1} parent=47 // pred_fallthru
        _
    $region48: #{tpu_custom_call.1} parent=5 // pred_fallthru
      _
    %p1635 = scmp.le.s32.totalorder 2, %s13
    // Predicated region
    $region53: #{tpu_custom_call.1} parent=5 // pred_check
      %p1636 = pneg %p1635
    $region54: #{tpu_custom_call.1} parent=5 // pred_check_branch
      %1638 = sbr.rel (%p1636) target = $region56
    $region55: #{tpu_custom_call.1} parent=5 // pred_region
      %s1639 = ssub.s32 %s13, 2
      // Predicated region
      $region57: #{tpu_custom_call.1} parent=55 // pred_check
        %p1640 = pneg %p194
      $region58: #{tpu_custom_call.1} parent=55 // pred_check_branch
        %1642 = sbr.rel (%p1640) target = $region60
      $region59: #{tpu_custom_call.1} parent=55 // pred_region
        %s1643 = smul.u32 32, %s19
        %p1644 = scmp.lt.s32.totalorder %s1643, 63
        %s1645 = scalar_select %p1644, %s1643, 63
        %s1646 = smul.addr %s1645, 8
        %s1647 = scalar_lea.vmem %s7, %s1646
      $region60: #{tpu_custom_call.1} parent=55 // pred_fallthru
        _
    $region56: #{tpu_custom_call.1} parent=5 // pred_fallthru
      _
  $region6: #{tpu_custom_call.1} parent=0 // loop_footer
    %s17 = sadd.s32 1, %s13
  $region7: #{tpu_custom_call.1} parent=0 // loop_footer_branch
    %12 = sbr.rel target = $region3
  $region8: #{tpu_custom_call.1} parent=0 // loop_exit
    _

</llo_original>
